<compile_context>
chip_gen: v7x
topology: tpu7x:2x2x1
jax: 0.10.0
libtpu: 0.0.40
codegen_flags: <defaults>
</compile_context>

<pallas_src>
import jax
import jax.numpy as jnp
from jax import lax
from jax.experimental import pallas as pl
from jax.experimental.pallas import tpu as pltpu


def _round_up(v, m):
    return (v + m - 1) // m * m


def _vmem_capacity_bytes():
    try:
        info = pltpu.get_tpu_info()
        for attr in ("vmem_capacity_bytes", "vmem_size_bytes"):
            v = getattr(info, attr, None)
            if v:
                return int(v)
    except Exception:
        pass
    return 64 * 1024 * 1024   # conservative (v7x per-TensorCore VMEM)


def _choose_tile(n, c, b, vmem_cap):
    """Pick the sequence tile so the (tn, c) dist/one-hot intermediates stay inside a
    conservative VMEM budget, keep tn a multiple of 8 (sublane), and give the grid at
    least 2 programs when possible (v7x megacore occupancy). Returns (tn, n_pad, nt)."""
    n8 = _round_up(n, 8)
    budget = min(max(vmem_cap // 4, 8 * 1024 * 1024), 40 * 1024 * 1024)
    # ~14 bytes / (tn, c) element of live intermediates (dist f32, iota i32, where i32,
    # one-hot bf16).
    tn_cap = max(128, min(1024, budget // max(14 * c, 1)))
    tn_cap = (tn_cap // 128) * 128
    if tn_cap < n8:
        tn = tn_cap
        n_pad = _round_up(n, tn)
        return tn, n_pad, n_pad // tn
    if b == 1 and n8 >= 16:
        # single batch element: split the sequence once so both TensorCores get work
        tn = _round_up((n8 + 1) // 2, 8)
        return tn, 2 * tn, 2
    return n8, n8, 1


def _make_kernel(n_valid, n_pad, tn, d, dim, c, d_pad):
    def kernel(x_ref, w_in_ref, b_in_ref, embed_nt_ref, embed_hi_ref, embed_lo_ref,
               w_out_ref, b_out_ref, xp_ref, ql_ref, qo_ref, ind_ref, loss_ref):
        xb = x_ref[0]                                                     # (tn, dim) f32

        # project_in: x @ W_in + b_in   (weights zero-padded to d_pad columns; exact)
        xp = jnp.dot(xb, w_in_ref[...], preferred_element_type=jnp.float32) + b_in_ref[...]
        xp_ref[0] = xp[:, :d]          # true-width store: no padded writeback / wrapper slice

        # l2norm (F.normalize semantics; padded columns are exactly zero)
        sumsq = jnp.sum(xp * xp, axis=-1, keepdims=True)
        xn = xp * lax.rsqrt(jnp.maximum(sumsq, 1e-24))                    # (tn, d_pad)

        # cosine-sim distances: (tn, d_pad) @ (d_pad, c) on the MXU, bf16 in / f32 acc.
        # Codebook was normalized + transposed + bf16-cast once in the wrapper.
        dist = jnp.dot(xn.astype(jnp.bfloat16), embed_nt_ref[...],
                       preferred_element_type=jnp.float32)                # (tn, c)

        # argmax along codebook axis (first max, matching torch.argmax / gumbel temp=0)
        iota_c = lax.broadcasted_iota(jnp.int32, (tn, c), 1)
        maxv = jnp.max(dist, axis=-1, keepdims=True)
        ind = jnp.min(jnp.where(dist == maxv, iota_c, c), axis=-1).astype(jnp.int32)
        ind_ref[...] = ind[None, None, :]                                 # 'encoding_indices'

        # Embedding gather as bf16 one-hot matmuls against the hi/lo split of the RAW
        # (un-normalized) codebook: one-hot is exact in bf16, hi + lo recovers the f32
        # codebook rows to ~1e-5 at ~2/3 the cost of an f32 (bf16x3) matmul.
        onehot = (iota_c == ind[:, None]).astype(jnp.bfloat16)            # (tn, c)
        quant = jnp.dot(onehot, embed_hi_ref[...], preferred_element_type=jnp.float32)
        quant = quant + jnp.dot(onehot, embed_lo_ref[...], preferred_element_type=jnp.float32)
        ql_ref[0] = quant[:, :d]                                          # 'quantize_latent'

        # partial sum of squared error for loss_vq_commit_pbe (normalized in wrapper);
        # rows past the true sequence length (zero-padding) are masked out.
        diff = quant - xp
        sq = diff * diff
        if n_pad != n_valid:
            row = lax.broadcasted_iota(jnp.int32, (tn, 1), 0) + pl.program_id(1) * tn
            sq = sq * (row < n_valid).astype(jnp.float32)
        loss_ref[...] = jnp.broadcast_to(jnp.sum(sq), (1, 1, 1, 1))

        # project_out: quantize @ W_out + b_out (padded rows of W_out are zero -> exact)
        qo = jnp.dot(quant, w_out_ref[...], preferred_element_type=jnp.float32) + b_out_ref[...]
        qo_ref[0] = qo                                                    # 'quantize_projected_out'

    return kernel


def vector_quantize_forward(x, w_in, b_in, embed, w_out, b_out, commitment_weight=1.0):
    b, n, dim = x.shape
    d = w_in.shape[1]          # codebook_dim * heads (heads = 1)
    c = embed.shape[0]         # codebook_size
    f32 = jnp.float32

    # MXU-friendly padding of the codebook feature dim only (weights/codebooks are tiny
    # and padded once here); activations keep their true widths for HBM I/O.
    d_pad = _round_up(d, 128)

    b_in = jnp.asarray(b_in).reshape(1, -1)
    b_out = jnp.asarray(b_out).reshape(1, -1)

    w_in_p = jnp.zeros((dim, d_pad), f32).at[:, :d].set(w_in.astype(f32))
    b_in_p = jnp.zeros((1, d_pad), f32).at[:, :d].set(b_in.astype(f32))
    w_out_p = jnp.zeros((d_pad, dim), f32).at[:d, :].set(w_out.astype(f32))
    b_out_p = b_out.astype(f32)

    embed_f32 = embed.astype(f32)
    # normalized codebook, pre-transposed to (d_pad, c) and bf16-cast for the dist matmul
    embed_n = embed_f32 / jnp.maximum(jnp.linalg.norm(embed_f32, axis=-1, keepdims=True), 1e-12)
    embed_nt_p = jnp.zeros((d_pad, c), jnp.bfloat16).at[:d, :].set(embed_n.T.astype(jnp.bfloat16))
    # raw codebook as a hi/lo bf16 split (hi + lo == f32 values to ~1e-5) for the gather
    embed_hi = embed_f32.astype(jnp.bfloat16)
    embed_lo = (embed_f32 - embed_hi.astype(f32)).astype(jnp.bfloat16)
    embed_hi_p = jnp.zeros((c, d_pad), jnp.bfloat16).at[:, :d].set(embed_hi)
    embed_lo_p = jnp.zeros((c, d_pad), jnp.bfloat16).at[:, :d].set(embed_lo)

    # VMEM-aware sequence tiling (+ padding to a tile multiple when n is not divisible).
    vmem_cap = _vmem_capacity_bytes()
    vmem_limit = max(32 * 1024 * 1024, min(int(vmem_cap * 0.85), 100 * 1024 * 1024))
    tn, n_pad, nt = _choose_tile(n, c, b, vmem_cap)
    x_p = x if n_pad == n else jnp.pad(x, ((0, 0), (0, n_pad - n), (0, 0)))

    grid = (b, nt)
    kernel = _make_kernel(n, n_pad, tn, d, dim, c, d_pad)

    out_shape = [
        jax.ShapeDtypeStruct((b, n_pad, d), f32),        # quantize_projected_in
        jax.ShapeDtypeStruct((b, n_pad, d), f32),        # quantize_latent
        jax.ShapeDtypeStruct((b, n_pad, dim), f32),      # quantize_projected_out
        jax.ShapeDtypeStruct((b, nt, tn), jnp.int32),    # encoding indices (per tile)
        jax.ShapeDtypeStruct((b, nt, 1, 1), f32),        # per-(batch, tile) sq-err partial sum
    ]

    def _run(single_buffer_invariants):
        def const_spec(shape):
            zeros = (0,) * len(shape)
            if single_buffer_invariants:
                # grid-invariant operand: no double-buffer VMEM reservation needed
                return pl.BlockSpec(shape, lambda i, j: zeros, pipeline_mode=pl.Buffered(1))
            return pl.BlockSpec(shape, lambda i, j: zeros)

        in_specs = [
            pl.BlockSpec((1, tn, dim), lambda i, j: (i, j, 0)),
            const_spec((dim, d_pad)),
            const_spec((1, d_pad)),
            const_spec((d_pad, c)),
            const_spec((c, d_pad)),
            const_spec((c, d_pad)),
            const_spec((d_pad, dim)),
            const_spec((1, dim)),
        ]
        out_specs = [
            pl.BlockSpec((1, tn, d), lambda i, j: (i, j, 0)),
            pl.BlockSpec((1, tn, d), lambda i, j: (i, j, 0)),
            pl.BlockSpec((1, tn, dim), lambda i, j: (i, j, 0)),
            pl.BlockSpec((1, 1, tn), lambda i, j: (i, j, 0)),
            pl.BlockSpec((1, 1, 1, 1), lambda i, j: (i, j, 0, 0)),
        ]
        return pl.pallas_call(
            kernel,
            out_shape=out_shape,
            grid=grid,
            in_specs=in_specs,
            out_specs=out_specs,
            compiler_params=pltpu.CompilerParams(
                dimension_semantics=("parallel", "parallel"),
                vmem_limit_bytes=vmem_limit),
        )(x_p, w_in_p, b_in_p, embed_nt_p, embed_hi_p, embed_lo_p, w_out_p, b_out_p)

    try:
        xp, ql, qo, ind, losssum = _run(True)
    except Exception:
        # pipeline_mode=pl.Buffered(1) unsupported on this jax build -> default buffering
        xp, ql, qo, ind, losssum = _run(False)

    # Wrapper-side glue: only slice when the sequence was actually padded.
    if n_pad != n:
        xp, ql, qo = xp[:, :n], ql[:, :n], qo[:, :n]
        ind = ind.reshape(b, n_pad)[:, :n]
    else:
        ind = ind.reshape(b, n)

    # loss = mse(quant, x.detach()) + cw * mse(quant.detach(), x)  ==  (1 + cw) * mse (eval)
    loss_pbe = jnp.sum(losssum[:, :, 0, 0], axis=1) * ((1.0 + commitment_weight) / float(n * d))

    # code histogram via scatter-add (cheaper than an O(n*c) in-kernel one-hot reduction)
    counts = jnp.zeros((c,), f32).at[ind.reshape(-1)].add(1.0)
    avg_probs = counts / float(b * n)
    perplexity = jnp.exp(-jnp.sum(avg_probs * jnp.log(avg_probs + 1e-10)))

    return {
        'quantize_projected_in': xp,
        'quantize_latent': ql,
        'quantize_projected_out': qo,
        'loss_vq_commit_pbe': loss_pbe,
        'perplexity': perplexity,
        'encoding_indices': ind,   # int32 (PyTorch returns int64)
    }


if __name__ == "__main__":
    B, N, DIM = 2, 8, 32
    CODEBOOK_DIM, CODEBOOK_SIZE = 16, 64

    key = jax.random.PRNGKey(0)
    kx, kwi, kbi, ke, kwo, kbo = jax.random.split(key, 6)

    x = jax.random.normal(kx, (B, N, DIM), jnp.float32)

    # project_in / project_out Linear params, stored as (in, out) so the kernel computes x @ W + b
    w_in = jax.random.normal(kwi, (DIM, CODEBOOK_DIM), jnp.float32) * 0.1
    b_in = jax.random.normal(kbi, (CODEBOOK_DIM,), jnp.float32) * 0.01
    w_out = jax.random.normal(kwo, (CODEBOOK_DIM, DIM), jnp.float32) * 0.1
    b_out = jax.random.normal(kbo, (DIM,), jnp.float32) * 0.01

    # codebook (num_codebooks=1 squeezed): l2-normalized uniform init (kmeans_init=False path)
    embed = jax.random.uniform(ke, (CODEBOOK_SIZE, CODEBOOK_DIM), jnp.float32, -1.0, 1.0)
    embed = embed / jnp.maximum(jnp.linalg.norm(embed, axis=-1, keepdims=True), 1e-12)

    out = vector_quantize_forward(x, w_in, b_in, embed, w_out, b_out, commitment_weight=1.0)
    out = jax.tree_util.tree_map(jax.block_until_ready, out)

    # ---- lightweight pure-JAX reference check ----
    xp_ref = x @ w_in + b_in
    xn_ref = xp_ref / jnp.maximum(jnp.linalg.norm(xp_ref, axis=-1, keepdims=True), 1e-12)
    embed_n = embed / jnp.maximum(jnp.linalg.norm(embed, axis=-1, keepdims=True), 1e-12)
    dist_f32 = xn_ref @ embed_n.T

    ind = out['encoding_indices']
    assert ind.shape == (B, N) and ind.dtype == jnp.int32
    assert bool(jnp.all((ind >= 0) & (ind < CODEBOOK_SIZE)))
    # bf16 distance matmul: the chosen code must attain the f32 max similarity within bf16 tol
    chosen = jnp.take_along_axis(dist_f32, ind[..., None], axis=-1)[..., 0]
    assert bool(jnp.all(chosen >= jnp.max(dist_f32, axis=-1) - 2e-2))

    q_ref = embed[ind]                       # gather from the raw codebook, like the module
    loss_ref = 2.0 * jnp.mean((q_ref - xp_ref) ** 2, axis=(1, 2))   # (1 + cw) * mse

    assert jnp.allclose(out['quantize_projected_in'], xp_ref, atol=2e-5)
    # hi/lo bf16 gather reproduces the f32 codebook rows to ~1e-5
    assert jnp.allclose(out['quantize_latent'], q_ref, atol=5e-5)
    assert jnp.allclose(out['quantize_projected_out'], q_ref @ w_out + b_out, atol=5e-5)
    assert jnp.allclose(out['loss_vq_commit_pbe'], loss_ref, atol=5e-5)

    onehot_ref = jax.nn.one_hot(ind.reshape(-1), CODEBOOK_SIZE, dtype=jnp.float32)
    avg = onehot_ref.mean(axis=0)
    perp_ref = jnp.exp(-jnp.sum(avg * jnp.log(avg + 1e-10)))
    assert jnp.allclose(out['perplexity'], perp_ref, atol=1e-4)

    print("KERNEL_OK")
</pallas_src>

<mosaic_0001>
module attributes {stable_mosaic.version = 11 : i64} {
  func.func @kernel(%arg0: i32, %arg1: i32, %arg2: memref<1x8x32xf32, #tpu.memory_space<vmem>>, %arg3: memref<32x128xf32, #tpu.memory_space<vmem>>, %arg4: memref<1x128xf32, #tpu.memory_space<vmem>>, %arg5: memref<128x64xbf16, #tpu.memory_space<vmem>>, %arg6: memref<64x128xbf16, #tpu.memory_space<vmem>>, %arg7: memref<64x128xbf16, #tpu.memory_space<vmem>>, %arg8: memref<128x32xf32, #tpu.memory_space<vmem>>, %arg9: memref<1x32xf32, #tpu.memory_space<vmem>>, %arg10: memref<1x8x16xf32, #tpu.memory_space<vmem>>, %arg11: memref<1x8x16xf32, #tpu.memory_space<vmem>>, %arg12: memref<1x8x32xf32, #tpu.memory_space<vmem>>, %arg13: memref<1x1x8xi32, #tpu.memory_space<vmem>>, %arg14: memref<1x1x1x1xf32, #tpu.memory_space<vmem>>) attributes {dimension_semantics = [#tpu.dimension_semantics<parallel>, #tpu.dimension_semantics<parallel>], iteration_bounds = array<i64: 2, 1>, scalar_prefetch = 0 : i64, scratch_operands = 0 : i64, tpu.core_type = #tpu.core_type<tc>, window_params = [{transform_indices = @transform_0, window_bounds = array<i64: 1, 8, 32>}, {pipeline_mode = #tpu.pipeline_mode<synchronous>, transform_indices = @transform_1, window_bounds = array<i64: 32, 128>}, {pipeline_mode = #tpu.pipeline_mode<synchronous>, transform_indices = @transform_2, window_bounds = array<i64: 1, 128>}, {pipeline_mode = #tpu.pipeline_mode<synchronous>, transform_indices = @transform_3, window_bounds = array<i64: 128, 64>}, {pipeline_mode = #tpu.pipeline_mode<synchronous>, transform_indices = @transform_4, window_bounds = array<i64: 64, 128>}, {pipeline_mode = #tpu.pipeline_mode<synchronous>, transform_indices = @transform_5, window_bounds = array<i64: 64, 128>}, {pipeline_mode = #tpu.pipeline_mode<synchronous>, transform_indices = @transform_6, window_bounds = array<i64: 128, 32>}, {pipeline_mode = #tpu.pipeline_mode<synchronous>, transform_indices = @transform_7, window_bounds = array<i64: 1, 32>}, {transform_indices = @transform_8, window_bounds = array<i64: 1, 8, 16>}, {transform_indices = @transform_9, window_bounds = array<i64: 1, 8, 16>}, {transform_indices = @transform_10, window_bounds = array<i64: 1, 8, 32>}, {transform_indices = @transform_11, window_bounds = array<i64: 1, 1, 8>}, {transform_indices = @transform_12, window_bounds = array<i64: 1, 1, 1, 1>}]} {
    %c0 = arith.constant 0 : index
    %c0_0 = arith.constant 0 : index
    %c0_1 = arith.constant 0 : index
    %0 = vector.load %arg2[%c0, %c0_0, %c0_1] : memref<1x8x32xf32, #tpu.memory_space<vmem>>, vector<1x8x32xf32>
    %1 = vector.shape_cast %0 : vector<1x8x32xf32> to vector<8x32xf32>
    %c0_2 = arith.constant 0 : index
    %c0_3 = arith.constant 0 : index
    %2 = vector.load %arg3[%c0_2, %c0_3] : memref<32x128xf32, #tpu.memory_space<vmem>>, vector<32x128xf32>
    %cst = arith.constant dense<0.000000e+00> : vector<8x128xf32>
    %3 = tpu.matmul %1, %2, %cst {dimension_numbers = #tpu.dot_dimension_numbers<[1], [0], [0], [1], [0, 0, 1, 1], [], []>} : vector<8x32xf32>, vector<32x128xf32>, vector<8x128xf32> -> vector<8x128xf32>
    %c0_4 = arith.constant 0 : index
    %c0_5 = arith.constant 0 : index
    %4 = vector.load %arg4[%c0_4, %c0_5] : memref<1x128xf32, #tpu.memory_space<vmem>>, vector<1x128xf32>
    %5 = vector.broadcast %4 : vector<1x128xf32> to vector<8x128xf32>
    %6 = arith.addf %3, %5 : vector<8x128xf32>
    %7 = vector.extract_strided_slice %6 {offsets = [0, 0], sizes = [8, 16], strides = [1, 1]} : vector<8x128xf32> to vector<8x16xf32>
    %c0_6 = arith.constant 0 : index
    %c0_7 = arith.constant 0 : index
    %c0_8 = arith.constant 0 : index
    %8 = vector.load %arg10[%c0_6, %c0_7, %c0_8] : memref<1x8x16xf32, #tpu.memory_space<vmem>>, vector<1x8x16xf32>
    %9 = vector.shape_cast %8 : vector<1x8x16xf32> to vector<8x16xf32>
    %10 = vector.shape_cast %7 : vector<8x16xf32> to vector<1x8x16xf32>
    tpu.vector_store %arg10[%c0_6, %c0_7, %c0_8], %10 {strides = array<i32>} : memref<1x8x16xf32, #tpu.memory_space<vmem>>, vector<1x8x16xf32>,
    %11 = arith.mulf %6, %6 : vector<8x128xf32>
    %cst_9 = arith.constant dense<0.000000e+00> : vector<8xf32>
    %12 = vector.multi_reduction <add>, %11, %cst_9 [1] : vector<8x128xf32> to vector<8xf32>
    %13 = vector.shape_cast %12 : vector<8xf32> to vector<8x1xf32>
    %cst_10 = arith.constant 1.000000e-24 : f32
    %14 = vector.broadcast %cst_10 : f32 to vector<8x1xf32>
    %15 = arith.maximumf %13, %14 : vector<8x1xf32>
    %16 = math.rsqrt %15 : vector<8x1xf32>
    %17 = vector.broadcast %16 : vector<8x1xf32> to vector<8x128xf32>
    %18 = arith.mulf %6, %17 : vector<8x128xf32>
    %19 = arith.truncf %18 : vector<8x128xf32> to vector<8x128xbf16>
    %c0_11 = arith.constant 0 : index
    %c0_12 = arith.constant 0 : index
    %20 = vector.load %arg5[%c0_11, %c0_12] : memref<128x64xbf16, #tpu.memory_space<vmem>>, vector<128x64xbf16>
    %cst_13 = arith.constant dense<0.000000e+00> : vector<8x64xf32>
    %21 = tpu.matmul %19, %20, %cst_13 {dimension_numbers = #tpu.dot_dimension_numbers<[1], [0], [0], [1], [0, 0, 1, 1], [], []>} : vector<8x128xbf16>, vector<128x64xbf16>, vector<8x64xf32> -> vector<8x64xf32>
    %22 = tpu.iota {dimensions = array<i32: 1>} : vector<8x64xi32>
    %cst_14 = arith.constant dense<0xFF800000> : vector<8xf32>
    %23 = vector.multi_reduction <maximumf>, %21, %cst_14 [1] : vector<8x64xf32> to vector<8xf32>
    %24 = vector.shape_cast %23 : vector<8xf32> to vector<8x1xf32>
    %25 = vector.broadcast %24 : vector<8x1xf32> to vector<8x64xf32>
    %26 = arith.cmpf oeq, %21, %25 : vector<8x64xf32>
    %c64_i32 = arith.constant 64 : i32
    %27 = vector.broadcast %c64_i32 : i32 to vector<8x64xi32>
    %28 = arith.select %26, %22, %27 : vector<8x64xi1>, vector<8x64xi32>
    %cst_15 = arith.constant dense<2147483647> : vector<8xi32>
    %29 = vector.multi_reduction <minsi>, %28, %cst_15 [1] : vector<8x64xi32> to vector<8xi32>
    %30 = vector.shape_cast %29 : vector<8xi32> to vector<1x1x8xi32>
    %c0_16 = arith.constant 0 : index
    %c0_17 = arith.constant 0 : index
    %c0_18 = arith.constant 0 : index
    %31 = vector.load %arg13[%c0_16, %c0_17, %c0_18] : memref<1x1x8xi32, #tpu.memory_space<vmem>>, vector<1x1x8xi32>
    tpu.vector_store %arg13[%c0_16, %c0_17, %c0_18], %30 {strides = array<i32>} : memref<1x1x8xi32, #tpu.memory_space<vmem>>, vector<1x1x8xi32>,
    %32 = vector.shape_cast %29 : vector<8xi32> to vector<8x1xi32>
    %33 = vector.broadcast %32 : vector<8x1xi32> to vector<8x64xi32>
    %34 = arith.cmpi eq, %22, %33 : vector<8x64xi32>
    %35 = arith.extui %34 : vector<8x64xi1> to vector<8x64xi32>
    %36 = arith.sitofp %35 : vector<8x64xi32> to vector<8x64xf32>
    %37 = arith.truncf %36 : vector<8x64xf32> to vector<8x64xbf16>
    %c0_19 = arith.constant 0 : index
    %c0_20 = arith.constant 0 : index
    %38 = vector.load %arg6[%c0_19, %c0_20] : memref<64x128xbf16, #tpu.memory_space<vmem>>, vector<64x128xbf16>
    %cst_21 = arith.constant dense<0.000000e+00> : vector<8x128xf32>
    %39 = tpu.matmul %37, %38, %cst_21 {dimension_numbers = #tpu.dot_dimension_numbers<[1], [0], [0], [1], [0, 0, 1, 1], [], []>} : vector<8x64xbf16>, vector<64x128xbf16>, vector<8x128xf32> -> vector<8x128xf32>
    %c0_22 = arith.constant 0 : index
    %c0_23 = arith.constant 0 : index
    %40 = vector.load %arg7[%c0_22, %c0_23] : memref<64x128xbf16, #tpu.memory_space<vmem>>, vector<64x128xbf16>
    %cst_24 = arith.constant dense<0.000000e+00> : vector<8x128xf32>
    %41 = tpu.matmul %37, %40, %cst_24 {dimension_numbers = #tpu.dot_dimension_numbers<[1], [0], [0], [1], [0, 0, 1, 1], [], []>} : vector<8x64xbf16>, vector<64x128xbf16>, vector<8x128xf32> -> vector<8x128xf32>
    %42 = arith.addf %39, %41 : vector<8x128xf32>
    %43 = vector.extract_strided_slice %42 {offsets = [0, 0], sizes = [8, 16], strides = [1, 1]} : vector<8x128xf32> to vector<8x16xf32>
    %c0_25 = arith.constant 0 : index
    %c0_26 = arith.constant 0 : index
    %c0_27 = arith.constant 0 : index
    %44 = vector.load %arg11[%c0_25, %c0_26, %c0_27] : memref<1x8x16xf32, #tpu.memory_space<vmem>>, vector<1x8x16xf32>
    %45 = vector.shape_cast %44 : vector<1x8x16xf32> to vector<8x16xf32>
    %46 = vector.shape_cast %43 : vector<8x16xf32> to vector<1x8x16xf32>
    tpu.vector_store %arg11[%c0_25, %c0_26, %c0_27], %46 {strides = array<i32>} : memref<1x8x16xf32, #tpu.memory_space<vmem>>, vector<1x8x16xf32>,
    %47 = arith.subf %42, %6 : vector<8x128xf32>
    %48 = arith.mulf %47, %47 : vector<8x128xf32>
    %49 = vector.shape_cast %48 : vector<8x128xf32> to vector<1x8x128xf32>
    %cst_28 = arith.constant dense<0.000000e+00> : vector<1xf32>
    %50 = vector.multi_reduction <add>, %49, %cst_28 [1, 2] : vector<1x8x128xf32> to vector<1xf32>
    %51 = vector.shape_cast %50 : vector<1xf32> to vector<1x1x1xf32>
    %52 = vector.extract %51[0, 0, 0] : f32 from vector<1x1x1xf32>
    %53 = vector.broadcast %52 : f32 to vector<1x1x1x1xf32>
    %c0_29 = arith.constant 0 : index
    %c0_30 = arith.constant 0 : index
    %c0_31 = arith.constant 0 : index
    %c0_32 = arith.constant 0 : index
    %54 = vector.load %arg14[%c0_29, %c0_30, %c0_31, %c0_32] : memref<1x1x1x1xf32, #tpu.memory_space<vmem>>, vector<1x1x1x1xf32>
    tpu.vector_store %arg14[%c0_29, %c0_30, %c0_31, %c0_32], %53 {strides = array<i32>} : memref<1x1x1x1xf32, #tpu.memory_space<vmem>>, vector<1x1x1x1xf32>,
    %c0_33 = arith.constant 0 : index
    %c0_34 = arith.constant 0 : index
    %55 = vector.load %arg8[%c0_33, %c0_34] : memref<128x32xf32, #tpu.memory_space<vmem>>, vector<128x32xf32>
    %cst_35 = arith.constant dense<0.000000e+00> : vector<8x32xf32>
    %56 = tpu.matmul %42, %55, %cst_35 {dimension_numbers = #tpu.dot_dimension_numbers<[1], [0], [0], [1], [0, 0, 1, 1], [], []>} : vector<8x128xf32>, vector<128x32xf32>, vector<8x32xf32> -> vector<8x32xf32>
    %c0_36 = arith.constant 0 : index
    %c0_37 = arith.constant 0 : index
    %57 = vector.load %arg9[%c0_36, %c0_37] : memref<1x32xf32, #tpu.memory_space<vmem>>, vector<1x32xf32>
    %58 = vector.broadcast %57 : vector<1x32xf32> to vector<8x32xf32>
    %59 = arith.addf %56, %58 : vector<8x32xf32>
    %c0_38 = arith.constant 0 : index
    %c0_39 = arith.constant 0 : index
    %c0_40 = arith.constant 0 : index
    %60 = vector.load %arg12[%c0_38, %c0_39, %c0_40] : memref<1x8x32xf32, #tpu.memory_space<vmem>>, vector<1x8x32xf32>
    %61 = vector.shape_cast %60 : vector<1x8x32xf32> to vector<8x32xf32>
    %62 = vector.shape_cast %59 : vector<8x32xf32> to vector<1x8x32xf32>
    tpu.vector_store %arg12[%c0_38, %c0_39, %c0_40], %62 {strides = array<i32>} : memref<1x8x32xf32, #tpu.memory_space<vmem>>, vector<1x8x32xf32>,
    return
  }
  func.func @transform_0(%arg0: i32, %arg1: i32) -> (i32, i32, i32) {
    %c0_i32 = arith.constant 0 : i32
    %c0_i32_0 = arith.constant 0 : i32
    return %arg0, %arg1, %c0_i32 : i32, i32, i32
  }
  func.func @transform_1(%arg0: i32, %arg1: i32) -> (i32, i32) {
    %c0_i32 = arith.constant 0 : i32
    %c0_i32_0 = arith.constant 0 : i32
    %c0_i32_1 = arith.constant 0 : i32
    return %c0_i32, %c0_i32_0 : i32, i32
  }
  func.func @transform_2(%arg0: i32, %arg1: i32) -> (i32, i32) {
    %c0_i32 = arith.constant 0 : i32
    %c0_i32_0 = arith.constant 0 : i32
    %c0_i32_1 = arith.constant 0 : i32
    return %c0_i32, %c0_i32_0 : i32, i32
  }
  func.func @transform_3(%arg0: i32, %arg1: i32) -> (i32, i32) {
    %c0_i32 = arith.constant 0 : i32
    %c0_i32_0 = arith.constant 0 : i32
    %c0_i32_1 = arith.constant 0 : i32
    return %c0_i32, %c0_i32_0 : i32, i32
  }
  func.func @transform_4(%arg0: i32, %arg1: i32) -> (i32, i32) {
    %c0_i32 = arith.constant 0 : i32
    %c0_i32_0 = arith.constant 0 : i32
    %c0_i32_1 = arith.constant 0 : i32
    return %c0_i32, %c0_i32_0 : i32, i32
  }
  func.func @transform_5(%arg0: i32, %arg1: i32) -> (i32, i32) {
    %c0_i32 = arith.constant 0 : i32
    %c0_i32_0 = arith.constant 0 : i32
    %c0_i32_1 = arith.constant 0 : i32
    return %c0_i32, %c0_i32_0 : i32, i32
  }
  func.func @transform_6(%arg0: i32, %arg1: i32) -> (i32, i32) {
    %c0_i32 = arith.constant 0 : i32
    %c0_i32_0 = arith.constant 0 : i32
    %c0_i32_1 = arith.constant 0 : i32
    return %c0_i32, %c0_i32_0 : i32, i32
  }
  func.func @transform_7(%arg0: i32, %arg1: i32) -> (i32, i32) {
    %c0_i32 = arith.constant 0 : i32
    %c0_i32_0 = arith.constant 0 : i32
    %c0_i32_1 = arith.constant 0 : i32
    return %c0_i32, %c0_i32_0 : i32, i32
  }
  func.func @transform_8(%arg0: i32, %arg1: i32) -> (i32, i32, i32) {
    %c0_i32 = arith.constant 0 : i32
    %c0_i32_0 = arith.constant 0 : i32
    return %arg0, %arg1, %c0_i32 : i32, i32, i32
  }
  func.func @transform_9(%arg0: i32, %arg1: i32) -> (i32, i32, i32) {
    %c0_i32 = arith.constant 0 : i32
    %c0_i32_0 = arith.constant 0 : i32
    return %arg0, %arg1, %c0_i32 : i32, i32, i32
  }
  func.func @transform_10(%arg0: i32, %arg1: i32) -> (i32, i32, i32) {
    %c0_i32 = arith.constant 0 : i32
    %c0_i32_0 = arith.constant 0 : i32
    return %arg0, %arg1, %c0_i32 : i32, i32, i32
  }
  func.func @transform_11(%arg0: i32, %arg1: i32) -> (i32, i32, i32) {
    %c0_i32 = arith.constant 0 : i32
    %c0_i32_0 = arith.constant 0 : i32
    return %arg0, %arg1, %c0_i32 : i32, i32, i32
  }
  func.func @transform_12(%arg0: i32, %arg1: i32) -> (i32, i32, i32, i32) {
    %c0_i32 = arith.constant 0 : i32
    %c0_i32_0 = arith.constant 0 : i32
    %c0_i32_1 = arith.constant 0 : i32
    return %arg0, %arg1, %c0_i32, %c0_i32_0 : i32, i32, i32, i32
  }
}

module attributes {stable_mosaic.version = 11 : i64} {
  func.func @kernel(%arg0: i32, %arg1: i32, %arg2: memref<1x8x32xf32, #tpu.memory_space<vmem>>, %arg3: memref<32x128xf32, #tpu.memory_space<vmem>>, %arg4: memref<1x128xf32, #tpu.memory_space<vmem>>, %arg5: memref<128x64xbf16, #tpu.memory_space<vmem>>, %arg6: memref<64x128xbf16, #tpu.memory_space<vmem>>, %arg7: memref<64x128xbf16, #tpu.memory_space<vmem>>, %arg8: memref<128x32xf32, #tpu.memory_space<vmem>>, %arg9: memref<1x32xf32, #tpu.memory_space<vmem>>, %arg10: memref<1x8x16xf32, #tpu.memory_space<vmem>>, %arg11: memref<1x8x16xf32, #tpu.memory_space<vmem>>, %arg12: memref<1x8x32xf32, #tpu.memory_space<vmem>>, %arg13: memref<1x1x8xi32, #tpu.memory_space<vmem>>, %arg14: memref<1x1x1x1xf32, #tpu.memory_space<vmem>>) attributes {dimension_semantics = [#tpu.dimension_semantics<parallel>, #tpu.dimension_semantics<parallel>], iteration_bounds = array<i64: 2, 1>, scalar_prefetch = 0 : i64, scratch_operands = 0 : i64, tpu.core_type = #tpu.core_type<tc>, window_params = [{transform_indices = @transform_0, window_bounds = array<i64: 1, 8, 32>}, {pipeline_mode = #tpu.pipeline_mode<synchronous>, transform_indices = @transform_1, window_bounds = array<i64: 32, 128>}, {pipeline_mode = #tpu.pipeline_mode<synchronous>, transform_indices = @transform_2, window_bounds = array<i64: 1, 128>}, {pipeline_mode = #tpu.pipeline_mode<synchronous>, transform_indices = @transform_3, window_bounds = array<i64: 128, 64>}, {pipeline_mode = #tpu.pipeline_mode<synchronous>, transform_indices = @transform_4, window_bounds = array<i64: 64, 128>}, {pipeline_mode = #tpu.pipeline_mode<synchronous>, transform_indices = @transform_5, window_bounds = array<i64: 64, 128>}, {pipeline_mode = #tpu.pipeline_mode<synchronous>, transform_indices = @transform_6, window_bounds = array<i64: 128, 32>}, {pipeline_mode = #tpu.pipeline_mode<synchronous>, transform_indices = @transform_7, window_bounds = array<i64: 1, 32>}, {transform_indices = @transform_8, window_bounds = array<i64: 1, 8, 16>}, {transform_indices = @transform_9, window_bounds = array<i64: 1, 8, 16>}, {transform_indices = @transform_10, window_bounds = array<i64: 1, 8, 32>}, {transform_indices = @transform_11, window_bounds = array<i64: 1, 1, 8>}, {transform_indices = @transform_12, window_bounds = array<i64: 1, 1, 1, 1>}]} {
    %c0 = arith.constant 0 : index
    %c0_0 = arith.constant 0 : index
    %c0_1 = arith.constant 0 : index
    %0 = vector.load %arg2[%c0, %c0_0, %c0_1] : memref<1x8x32xf32, #tpu.memory_space<vmem>>, vector<1x8x32xf32>
    %1 = vector.shape_cast %0 : vector<1x8x32xf32> to vector<8x32xf32>
    %c0_2 = arith.constant 0 : index
    %c0_3 = arith.constant 0 : index
    %2 = vector.load %arg3[%c0_2, %c0_3] : memref<32x128xf32, #tpu.memory_space<vmem>>, vector<32x128xf32>
    %cst = arith.constant dense<0.000000e+00> : vector<8x128xf32>
    %3 = tpu.matmul %1, %2, %cst {dimension_numbers = #tpu.dot_dimension_numbers<[1], [0], [0], [1], [0, 0, 1, 1], [], []>} : vector<8x32xf32>, vector<32x128xf32>, vector<8x128xf32> -> vector<8x128xf32>
    %c0_4 = arith.constant 0 : index
    %c0_5 = arith.constant 0 : index
    %4 = vector.load %arg4[%c0_4, %c0_5] : memref<1x128xf32, #tpu.memory_space<vmem>>, vector<1x128xf32>
    %5 = vector.broadcast %4 : vector<1x128xf32> to vector<8x128xf32>
    %6 = arith.addf %3, %5 : vector<8x128xf32>
    %7 = vector.extract_strided_slice %6 {offsets = [0, 0], sizes = [8, 16], strides = [1, 1]} : vector<8x128xf32> to vector<8x16xf32>
    %c0_6 = arith.constant 0 : index
    %c0_7 = arith.constant 0 : index
    %c0_8 = arith.constant 0 : index
    %8 = vector.load %arg10[%c0_6, %c0_7, %c0_8] : memref<1x8x16xf32, #tpu.memory_space<vmem>>, vector<1x8x16xf32>
    %9 = vector.shape_cast %8 : vector<1x8x16xf32> to vector<8x16xf32>
    %10 = vector.shape_cast %7 : vector<8x16xf32> to vector<1x8x16xf32>
    tpu.vector_store %arg10[%c0_6, %c0_7, %c0_8], %10 {strides = array<i32>} : memref<1x8x16xf32, #tpu.memory_space<vmem>>, vector<1x8x16xf32>,
    %11 = arith.mulf %6, %6 : vector<8x128xf32>
    %cst_9 = arith.constant dense<0.000000e+00> : vector<8xf32>
    %12 = vector.multi_reduction <add>, %11, %cst_9 [1] : vector<8x128xf32> to vector<8xf32>
    %13 = vector.shape_cast %12 : vector<8xf32> to vector<8x1xf32>
    %cst_10 = arith.constant 1.000000e-24 : f32
    %14 = vector.broadcast %cst_10 : f32 to vector<8x1xf32>
    %15 = arith.maximumf %13, %14 : vector<8x1xf32>
    %16 = math.rsqrt %15 : vector<8x1xf32>
    %17 = vector.broadcast %16 : vector<8x1xf32> to vector<8x128xf32>
    %18 = arith.mulf %6, %17 : vector<8x128xf32>
    %19 = arith.truncf %18 : vector<8x128xf32> to vector<8x128xbf16>
    %c0_11 = arith.constant 0 : index
    %c0_12 = arith.constant 0 : index
    %20 = vector.load %arg5[%c0_11, %c0_12] : memref<128x64xbf16, #tpu.memory_space<vmem>>, vector<128x64xbf16>
    %cst_13 = arith.constant dense<0.000000e+00> : vector<8x64xf32>
    %21 = tpu.matmul %19, %20, %cst_13 {dimension_numbers = #tpu.dot_dimension_numbers<[1], [0], [0], [1], [0, 0, 1, 1], [], []>} : vector<8x128xbf16>, vector<128x64xbf16>, vector<8x64xf32> -> vector<8x64xf32>
    %22 = tpu.iota {dimensions = array<i32: 1>} : vector<8x64xi32>
    %cst_14 = arith.constant dense<0xFF800000> : vector<8xf32>
    %23 = vector.multi_reduction <maximumf>, %21, %cst_14 [1] : vector<8x64xf32> to vector<8xf32>
    %24 = vector.shape_cast %23 : vector<8xf32> to vector<8x1xf32>
    %25 = vector.broadcast %24 : vector<8x1xf32> to vector<8x64xf32>
    %26 = arith.cmpf oeq, %21, %25 : vector<8x64xf32>
    %c64_i32 = arith.constant 64 : i32
    %27 = vector.broadcast %c64_i32 : i32 to vector<8x64xi32>
    %28 = arith.select %26, %22, %27 : vector<8x64xi1>, vector<8x64xi32>
    %cst_15 = arith.constant dense<2147483647> : vector<8xi32>
    %29 = vector.multi_reduction <minsi>, %28, %cst_15 [1] : vector<8x64xi32> to vector<8xi32>
    %30 = vector.shape_cast %29 : vector<8xi32> to vector<1x1x8xi32>
    %c0_16 = arith.constant 0 : index
    %c0_17 = arith.constant 0 : index
    %c0_18 = arith.constant 0 : index
    %31 = vector.load %arg13[%c0_16, %c0_17, %c0_18] : memref<1x1x8xi32, #tpu.memory_space<vmem>>, vector<1x1x8xi32>
    tpu.vector_store %arg13[%c0_16, %c0_17, %c0_18], %30 {strides = array<i32>} : memref<1x1x8xi32, #tpu.memory_space<vmem>>, vector<1x1x8xi32>,
    %32 = vector.shape_cast %29 : vector<8xi32> to vector<8x1xi32>
    %33 = vector.broadcast %32 : vector<8x1xi32> to vector<8x64xi32>
    %34 = arith.cmpi eq, %22, %33 : vector<8x64xi32>
    %35 = arith.extui %34 : vector<8x64xi1> to vector<8x64xi32>
    %36 = arith.sitofp %35 : vector<8x64xi32> to vector<8x64xf32>
    %37 = arith.truncf %36 : vector<8x64xf32> to vector<8x64xbf16>
    %c0_19 = arith.constant 0 : index
    %c0_20 = arith.constant 0 : index
    %38 = vector.load %arg6[%c0_19, %c0_20] : memref<64x128xbf16, #tpu.memory_space<vmem>>, vector<64x128xbf16>
    %cst_21 = arith.constant dense<0.000000e+00> : vector<8x128xf32>
    %39 = tpu.matmul %37, %38, %cst_21 {dimension_numbers = #tpu.dot_dimension_numbers<[1], [0], [0], [1], [0, 0, 1, 1], [], []>} : vector<8x64xbf16>, vector<64x128xbf16>, vector<8x128xf32> -> vector<8x128xf32>
    %c0_22 = arith.constant 0 : index
    %c0_23 = arith.constant 0 : index
    %40 = vector.load %arg7[%c0_22, %c0_23] : memref<64x128xbf16, #tpu.memory_space<vmem>>, vector<64x128xbf16>
    %cst_24 = arith.constant dense<0.000000e+00> : vector<8x128xf32>
    %41 = tpu.matmul %37, %40, %cst_24 {dimension_numbers = #tpu.dot_dimension_numbers<[1], [0], [0], [1], [0, 0, 1, 1], [], []>} : vector<8x64xbf16>, vector<64x128xbf16>, vector<8x128xf32> -> vector<8x128xf32>
    %42 = arith.addf %39, %41 : vector<8x128xf32>
    %43 = vector.extract_strided_slice %42 {offsets = [0, 0], sizes = [8, 16], strides = [1, 1]} : vector<8x128xf32> to vector<8x16xf32>
    %c0_25 = arith.constant 0 : index
    %c0_26 = arith.constant 0 : index
    %c0_27 = arith.constant 0 : index
    %44 = vector.load %arg11[%c0_25, %c0_26, %c0_27] : memref<1x8x16xf32, #tpu.memory_space<vmem>>, vector<1x8x16xf32>
    %45 = vector.shape_cast %44 : vector<1x8x16xf32> to vector<8x16xf32>
    %46 = vector.shape_cast %43 : vector<8x16xf32> to vector<1x8x16xf32>
    tpu.vector_store %arg11[%c0_25, %c0_26, %c0_27], %46 {strides = array<i32>} : memref<1x8x16xf32, #tpu.memory_space<vmem>>, vector<1x8x16xf32>,
    %47 = arith.subf %42, %6 : vector<8x128xf32>
    %48 = arith.mulf %47, %47 : vector<8x128xf32>
    %49 = vector.shape_cast %48 : vector<8x128xf32> to vector<1x8x128xf32>
    %cst_28 = arith.constant dense<0.000000e+00> : vector<1xf32>
    %50 = vector.multi_reduction <add>, %49, %cst_28 [1, 2] : vector<1x8x128xf32> to vector<1xf32>
    %51 = vector.shape_cast %50 : vector<1xf32> to vector<1x1x1xf32>
    %52 = vector.extract %51[0, 0, 0] : f32 from vector<1x1x1xf32>
    %53 = vector.broadcast %52 : f32 to vector<1x1x1x1xf32>
    %c0_29 = arith.constant 0 : index
    %c0_30 = arith.constant 0 : index
    %c0_31 = arith.constant 0 : index
    %c0_32 = arith.constant 0 : index
    %54 = vector.load %arg14[%c0_29, %c0_30, %c0_31, %c0_32] : memref<1x1x1x1xf32, #tpu.memory_space<vmem>>, vector<1x1x1x1xf32>
    tpu.vector_store %arg14[%c0_29, %c0_30, %c0_31, %c0_32], %53 {strides = array<i32>} : memref<1x1x1x1xf32, #tpu.memory_space<vmem>>, vector<1x1x1x1xf32>,
    %c0_33 = arith.constant 0 : index
    %c0_34 = arith.constant 0 : index
    %55 = vector.load %arg8[%c0_33, %c0_34] : memref<128x32xf32, #tpu.memory_space<vmem>>, vector<128x32xf32>
    %cst_35 = arith.constant dense<0.000000e+00> : vector<8x32xf32>
    %56 = tpu.matmul %42, %55, %cst_35 {dimension_numbers = #tpu.dot_dimension_numbers<[1], [0], [0], [1], [0, 0, 1, 1], [], []>} : vector<8x128xf32>, vector<128x32xf32>, vector<8x32xf32> -> vector<8x32xf32>
    %c0_36 = arith.constant 0 : index
    %c0_37 = arith.constant 0 : index
    %57 = vector.load %arg9[%c0_36, %c0_37] : memref<1x32xf32, #tpu.memory_space<vmem>>, vector<1x32xf32>
    %58 = vector.broadcast %57 : vector<1x32xf32> to vector<8x32xf32>
    %59 = arith.addf %56, %58 : vector<8x32xf32>
    %c0_38 = arith.constant 0 : index
    %c0_39 = arith.constant 0 : index
    %c0_40 = arith.constant 0 : index
    %60 = vector.load %arg12[%c0_38, %c0_39, %c0_40] : memref<1x8x32xf32, #tpu.memory_space<vmem>>, vector<1x8x32xf32>
    %61 = vector.shape_cast %60 : vector<1x8x32xf32> to vector<8x32xf32>
    %62 = vector.shape_cast %59 : vector<8x32xf32> to vector<1x8x32xf32>
    tpu.vector_store %arg12[%c0_38, %c0_39, %c0_40], %62 {strides = array<i32>} : memref<1x8x32xf32, #tpu.memory_space<vmem>>, vector<1x8x32xf32>,
    return
  }
  func.func @transform_0(%arg0: i32, %arg1: i32) -> (i32, i32, i32) {
    %c0_i32 = arith.constant 0 : i32
    %c0_i32_0 = arith.constant 0 : i32
    return %arg0, %arg1, %c0_i32 : i32, i32, i32
  }
  func.func @transform_1(%arg0: i32, %arg1: i32) -> (i32, i32) {
    %c0_i32 = arith.constant 0 : i32
    %c0_i32_0 = arith.constant 0 : i32
    %c0_i32_1 = arith.constant 0 : i32
    return %c0_i32, %c0_i32_0 : i32, i32
  }
  func.func @transform_2(%arg0: i32, %arg1: i32) -> (i32, i32) {
    %c0_i32 = arith.constant 0 : i32
    %c0_i32_0 = arith.constant 0 : i32
    %c0_i32_1 = arith.constant 0 : i32
    return %c0_i32, %c0_i32_0 : i32, i32
  }
  func.func @transform_3(%arg0: i32, %arg1: i32) -> (i32, i32) {
    %c0_i32 = arith.constant 0 : i32
    %c0_i32_0 = arith.constant 0 : i32
    %c0_i32_1 = arith.constant 0 : i32
    return %c0_i32, %c0_i32_0 : i32, i32
  }
  func.func @transform_4(%arg0: i32, %arg1: i32) -> (i32, i32) {
    %c0_i32 = arith.constant 0 : i32
    %c0_i32_0 = arith.constant 0 : i32
    %c0_i32_1 = arith.constant 0 : i32
    return %c0_i32, %c0_i32_0 : i32, i32
  }
  func.func @transform_5(%arg0: i32, %arg1: i32) -> (i32, i32) {
    %c0_i32 = arith.constant 0 : i32
    %c0_i32_0 = arith.constant 0 : i32
    %c0_i32_1 = arith.constant 0 : i32
    return %c0_i32, %c0_i32_0 : i32, i32
  }
  func.func @transform_6(%arg0: i32, %arg1: i32) -> (i32, i32) {
    %c0_i32 = arith.constant 0 : i32
    %c0_i32_0 = arith.constant 0 : i32
    %c0_i32_1 = arith.constant 0 : i32
    return %c0_i32, %c0_i32_0 : i32, i32
  }
  func.func @transform_7(%arg0: i32, %arg1: i32) -> (i32, i32) {
    %c0_i32 = arith.constant 0 : i32
    %c0_i32_0 = arith.constant 0 : i32
    %c0_i32_1 = arith.constant 0 : i32
    return %c0_i32, %c0_i32_0 : i32, i32
  }
  func.func @transform_8(%arg0: i32, %arg1: i32) -> (i32, i32, i32) {
    %c0_i32 = arith.constant 0 : i32
    %c0_i32_0 = arith.constant 0 : i32
    return %arg0, %arg1, %c0_i32 : i32, i32, i32
  }
  func.func @transform_9(%arg0: i32, %arg1: i32) -> (i32, i32, i32) {
    %c0_i32 = arith.constant 0 : i32
    %c0_i32_0 = arith.constant 0 : i32
    return %arg0, %arg1, %c0_i32 : i32, i32, i32
  }
  func.func @transform_10(%arg0: i32, %arg1: i32) -> (i32, i32, i32) {
    %c0_i32 = arith.constant 0 : i32
    %c0_i32_0 = arith.constant 0 : i32
    return %arg0, %arg1, %c0_i32 : i32, i32, i32
  }
  func.func @transform_11(%arg0: i32, %arg1: i32) -> (i32, i32, i32) {
    %c0_i32 = arith.constant 0 : i32
    %c0_i32_0 = arith.constant 0 : i32
    return %arg0, %arg1, %c0_i32 : i32, i32, i32
  }
  func.func @transform_12(%arg0: i32, %arg1: i32) -> (i32, i32, i32, i32) {
    %c0_i32 = arith.constant 0 : i32
    %c0_i32_0 = arith.constant 0 : i32
    %c0_i32_1 = arith.constant 0 : i32
    return %arg0, %arg1, %c0_i32, %c0_i32_0 : i32, i32, i32, i32
  }
}

</mosaic_0001>

<llo_original>
// kernel: tpu_custom_call.1
$region0: #{tpu_custom_call.1}
  #allocation0 [shape = 'u32[]', space=smem, size = 0x4, offset = 0x4, fixed_abs, tag = 'smem constant byte address 0x4 - core index']
  #allocation1 [shape = 'u32[144,128]{1,0:T(1,128)}', space=vmem, size = 0x12000, scoped, tag = 'internal scratch']
  %s0 = inlined_call_operand.vmem [shape: f32[2,8,32], index: 0, kind: input, shape index: {}]
  %s1 = inlined_call_operand.vmem [shape: f32[32,128], index: 1, kind: input, shape index: {}]
  %s2 = inlined_call_operand.vmem [shape: f32[1,128], index: 2, kind: input, shape index: {}]
  %s3 = inlined_call_operand.vmem [shape: bf16[128,64], index: 3, kind: input, shape index: {}]
  %s4 = inlined_call_operand.vmem [shape: bf16[64,128], index: 4, kind: input, shape index: {}]
  %s5 = inlined_call_operand.vmem [shape: bf16[64,128], index: 5, kind: input, shape index: {}]
  %s6 = inlined_call_operand.vmem [shape: f32[128,32], index: 6, kind: input, shape index: {}]
  %s7 = inlined_call_operand.vmem [shape: f32[1,32], index: 7, kind: input, shape index: {}]
  %s8 = inlined_call_operand.hbm [shape: f32[2,8,16], index: 8, kind: output, shape index: {0}]
  %s9 = inlined_call_operand.hbm [shape: f32[2,8,16], index: 9, kind: output, shape index: {1}]
  %s10 = inlined_call_operand.hbm [shape: f32[2,8,32], index: 10, kind: output, shape index: {2}]
  %s11 = inlined_call_operand.hbm [shape: s32[2,1,8], index: 11, kind: output, shape index: {3}]
  %s12 = inlined_call_operand.vmem [shape: f32[2,1,1,1], index: 12, kind: output, shape index: {4}]
  %13 = xla_tuple %s8, %s9, %s10, %s11, %s12
  %s14 = sld [smem:[#allocation0]]
  $region97: #{tpu_custom_call.1} parent=0
    _
  %s16 = ssub.s32 1, %s14
  %s17 = scalar_select 0, %s16, %s14
  $region1: #{tpu_custom_call.1} parent=0
    #allocation2 [shape = 'u8[8192]{0}', space=vmem, size = 0x2000, scoped, tag = 'output window, operand 0']
    #allocation3 [shape = 's32[2]{0}', space=sflag, size = 0x8, scoped, tag = 'scoped memory for tpu_custom_call.1']
    #allocation4 [shape = 'u8[8192]{0}', space=vmem, size = 0x2000, scoped, tag = 'output window, operand 1']
    #allocation5 [shape = 's32[2]{0}', space=sflag, size = 0x8, scoped, tag = 'scoped memory for tpu_custom_call.1']
    #allocation6 [shape = 'u8[8192]{0}', space=vmem, size = 0x2000, scoped, tag = 'output window, operand 2']
    #allocation7 [shape = 'u8[1024]{0}', space=vmem, size = 0x400, scoped, tag = 'output window, operand 3']
    #allocation8 [shape = 's32[2]{0}', space=sflag, size = 0x8, scoped, tag = 'scoped memory for tpu_custom_call.1']
    %18 = vsyncpa [#allocation3], 0
    %s19 = scalar_lea.sflag [#allocation3], 1
    %20 = vsyncpa %s19, 0
    %21 = vsyncpa [#allocation5], 0
    %s22 = scalar_lea.sflag [#allocation5], 1
    %23 = vsyncpa %s22, 0
    %24 = vsyncpa [#allocation8], 0
    %s25 = scalar_lea.sflag [#allocation8], 1
    %26 = vsyncpa %s25, 0
    loop: start=0, step=1, limit=4
    $region2: #{tpu_custom_call.1} parent=1 // loop_pre_header
      _
    $region3: #{tpu_custom_call.1} parent=1 // loop_header
      %s28 = sphi 0, %s32
      %p29 = scmp.ge.s32.totalorder %s28, 4
      %s35 = sphi 0, %s47
      %s36 = sphi 0, %s43
      %s37 = sphi 0, %s35
      %s38 = sphi 0, %s36
      %s39 = sphi 0, %s37
      %s40 = sphi 0, %s38
      %s52 = sphi 0, %s54
      %s55 = sphi 0, %s52
      %s56 = sphi 0, %s55
      %s72 = sphi 0, %s56
      %s76 = sphi 0, %s76
      %s78 = sphi 0, %s76
      %s79 = sphi 0, %s78
      %s93 = sphi 0, %s79
      %s97 = sphi 0, %s97
      %s99 = sphi 0, %s97
      %s100 = sphi 0, %s99
      %s114 = sphi 0, %s100
      %s118 = sphi 0, %s118
      %s120 = sphi 0, %s118
      %s121 = sphi 0, %s120
      %s135 = sphi 0, %s121
      %s139 = sphi 0, %s139
      %s141 = sphi 0, %s139
      %s142 = sphi 0, %s141
      %s156 = sphi 0, %s142
      %s160 = sphi 0, %s160
      %s162 = sphi 0, %s160
      %s163 = sphi 0, %s162
      %s177 = sphi 0, %s163
      %s181 = sphi 0, %s181
      %s183 = sphi 0, %s181
      %s184 = sphi 0, %s183
      %s198 = sphi 0, %s184
      %s202 = sphi 0, %s202
      %s204 = sphi 0, %s202
      %s205 = sphi 0, %s204
      %s219 = sphi 0, %s205
      %s227 = sphi 0, %s229
      %s230 = sphi 0, %s227
      %s231 = sphi 0, %s230
      %s247 = sphi 0, %s231
      %s255 = sphi 0, %s257
      %s258 = sphi 0, %s255
      %s259 = sphi 0, %s258
      %s275 = sphi 0, %s259
      %s283 = sphi 0, %s285
      %s286 = sphi 0, %s283
      %s287 = sphi 0, %s286
      %s303 = sphi 0, %s287
      %s311 = sphi 0, %s313
      %s314 = sphi 0, %s311
      %s315 = sphi 0, %s314
      %s331 = sphi 0, %s315
      %s339 = sphi 0, %s341
      %s342 = sphi 0, %s339
      %s343 = sphi 0, %s342
      %s359 = sphi 0, %s343
    $region4: #{tpu_custom_call.1} parent=1 // loop_header_branch
      %31 = sbr.rel (%p29) target = $region8
    $region5: #{tpu_custom_call.1} parent=1 // loop_body
      %s33 = ssub.s32 %s28, 1
      %s34 = ssub.s32 %s28, 2
      %s41 = sadd.s32 1, %s36
      %p42 = scmp.ge.s32.totalorder %s41, 1
      %s43 = scalar_select %p42, 0, %s41
      %s44 = sadd.s32 1, %s35
      %s45 = scalar_select %p42, %s44, %s35
      %p46 = scmp.ge.s32.totalorder %s45, 2
      %s47 = scalar_select %p46, 0, %s45
      %s48 = ssub.s32 %s35, %s47
      %s49 = ssub.s32 %s36, %s43
      %s50 = sor.u32 %s48, %s49
      %p51 = scmp.eq.s32.totalorder %s50, 0
      %s53 = sadd.s32 %s52, 1
      %s54 = scalar_select %p51, %s52, %s53
      %p57 = pneg %p51
      %p58 = scmp.eq.s32.totalorder %s28, 1
      %p59 = por %p57, %p58
      %p60 = scmp.ne.s32.totalorder %s52, %s55
      %p61 = scmp.eq.s32.totalorder %s28, 0
      %p62 = por %p60, %p61
      %p63 = scmp.ne.s32.totalorder %s52, %s55
      %p64 = scmp.eq.s32.totalorder %s33, 1
      %p65 = por %p63, %p64
      %p66 = scmp.ne.s32.totalorder %s55, %s56
      %p67 = scmp.eq.s32.totalorder %s33, 0
      %p68 = por %p66, %p67
      %p69 = scmp.ne.s32.totalorder %s55, %s56
      %p70 = scmp.eq.s32.totalorder %s34, 1
      %p71 = por %p69, %p70
      %p73 = scmp.ne.s32.totalorder %s56, %s72
      %p74 = scmp.eq.s32.totalorder %s34, 0
      %p75 = por %p73, %p74
      %s77 = sadd.s32 %s76, 1
      %p80 = scmp.eq.s32.totalorder %s28, 1
      %p81 = scmp.ne.s32.totalorder %s76, %s78
      %p82 = scmp.eq.s32.totalorder %s28, 0
      %p83 = por %p81, %p82
      %p84 = scmp.ne.s32.totalorder %s76, %s78
      %p85 = scmp.eq.s32.totalorder %s33, 1
      %p86 = por %p84, %p85
      %p87 = scmp.ne.s32.totalorder %s78, %s79
      %p88 = scmp.eq.s32.totalorder %s33, 0
      %p89 = por %p87, %p88
      %p90 = scmp.ne.s32.totalorder %s78, %s79
      %p91 = scmp.eq.s32.totalorder %s34, 1
      %p92 = por %p90, %p91
      %p94 = scmp.ne.s32.totalorder %s79, %s93
      %p95 = scmp.eq.s32.totalorder %s34, 0
      %p96 = por %p94, %p95
      %s98 = sadd.s32 %s97, 1
      %p101 = scmp.eq.s32.totalorder %s28, 1
      %p102 = scmp.ne.s32.totalorder %s97, %s99
      %p103 = scmp.eq.s32.totalorder %s28, 0
      %p104 = por %p102, %p103
      %p105 = scmp.ne.s32.totalorder %s97, %s99
      %p106 = scmp.eq.s32.totalorder %s33, 1
      %p107 = por %p105, %p106
      %p108 = scmp.ne.s32.totalorder %s99, %s100
      %p109 = scmp.eq.s32.totalorder %s33, 0
      %p110 = por %p108, %p109
      %p111 = scmp.ne.s32.totalorder %s99, %s100
      %p112 = scmp.eq.s32.totalorder %s34, 1
      %p113 = por %p111, %p112
      %p115 = scmp.ne.s32.totalorder %s100, %s114
      %p116 = scmp.eq.s32.totalorder %s34, 0
      %p117 = por %p115, %p116
      %s119 = sadd.s32 %s118, 1
      %p122 = scmp.eq.s32.totalorder %s28, 1
      %p123 = scmp.ne.s32.totalorder %s118, %s120
      %p124 = scmp.eq.s32.totalorder %s28, 0
      %p125 = por %p123, %p124
      %p126 = scmp.ne.s32.totalorder %s118, %s120
      %p127 = scmp.eq.s32.totalorder %s33, 1
      %p128 = por %p126, %p127
      %p129 = scmp.ne.s32.totalorder %s120, %s121
      %p130 = scmp.eq.s32.totalorder %s33, 0
      %p131 = por %p129, %p130
      %p132 = scmp.ne.s32.totalorder %s120, %s121
      %p133 = scmp.eq.s32.totalorder %s34, 1
      %p134 = por %p132, %p133
      %p136 = scmp.ne.s32.totalorder %s121, %s135
      %p137 = scmp.eq.s32.totalorder %s34, 0
      %p138 = por %p136, %p137
      %s140 = sadd.s32 %s139, 1
      %p143 = scmp.eq.s32.totalorder %s28, 1
      %p144 = scmp.ne.s32.totalorder %s139, %s141
      %p145 = scmp.eq.s32.totalorder %s28, 0
      %p146 = por %p144, %p145
      %p147 = scmp.ne.s32.totalorder %s139, %s141
      %p148 = scmp.eq.s32.totalorder %s33, 1
      %p149 = por %p147, %p148
      %p150 = scmp.ne.s32.totalorder %s141, %s142
      %p151 = scmp.eq.s32.totalorder %s33, 0
      %p152 = por %p150, %p151
      %p153 = scmp.ne.s32.totalorder %s141, %s142
      %p154 = scmp.eq.s32.totalorder %s34, 1
      %p155 = por %p153, %p154
      %p157 = scmp.ne.s32.totalorder %s142, %s156
      %p158 = scmp.eq.s32.totalorder %s34, 0
      %p159 = por %p157, %p158
      %s161 = sadd.s32 %s160, 1
      %p164 = scmp.eq.s32.totalorder %s28, 1
      %p165 = scmp.ne.s32.totalorder %s160, %s162
      %p166 = scmp.eq.s32.totalorder %s28, 0
      %p167 = por %p165, %p166
      %p168 = scmp.ne.s32.totalorder %s160, %s162
      %p169 = scmp.eq.s32.totalorder %s33, 1
      %p170 = por %p168, %p169
      %p171 = scmp.ne.s32.totalorder %s162, %s163
      %p172 = scmp.eq.s32.totalorder %s33, 0
      %p173 = por %p171, %p172
      %p174 = scmp.ne.s32.totalorder %s162, %s163
      %p175 = scmp.eq.s32.totalorder %s34, 1
      %p176 = por %p174, %p175
      %p178 = scmp.ne.s32.totalorder %s163, %s177
      %p179 = scmp.eq.s32.totalorder %s34, 0
      %p180 = por %p178, %p179
      %s182 = sadd.s32 %s181, 1
      %p185 = scmp.eq.s32.totalorder %s28, 1
      %p186 = scmp.ne.s32.totalorder %s181, %s183
      %p187 = scmp.eq.s32.totalorder %s28, 0
      %p188 = por %p186, %p187
      %p189 = scmp.ne.s32.totalorder %s181, %s183
      %p190 = scmp.eq.s32.totalorder %s33, 1
      %p191 = por %p189, %p190
      %p192 = scmp.ne.s32.totalorder %s183, %s184
      %p193 = scmp.eq.s32.totalorder %s33, 0
      %p194 = por %p192, %p193
      %p195 = scmp.ne.s32.totalorder %s183, %s184
      %p196 = scmp.eq.s32.totalorder %s34, 1
      %p197 = por %p195, %p196
      %p199 = scmp.ne.s32.totalorder %s184, %s198
      %p200 = scmp.eq.s32.totalorder %s34, 0
      %p201 = por %p199, %p200
      %s203 = sadd.s32 %s202, 1
      %p206 = scmp.eq.s32.totalorder %s28, 1
      %p207 = scmp.ne.s32.totalorder %s202, %s204
      %p208 = scmp.eq.s32.totalorder %s28, 0
      %p209 = por %p207, %p208
      %p210 = scmp.ne.s32.totalorder %s202, %s204
      %p211 = scmp.eq.s32.totalorder %s33, 1
      %p212 = por %p210, %p211
      %p213 = scmp.ne.s32.totalorder %s204, %s205
      %p214 = scmp.eq.s32.totalorder %s33, 0
      %p215 = por %p213, %p214
      %p216 = scmp.ne.s32.totalorder %s204, %s205
      %p217 = scmp.eq.s32.totalorder %s34, 1
      %p218 = por %p216, %p217
      %p220 = scmp.ne.s32.totalorder %s205, %s219
      %p221 = scmp.eq.s32.totalorder %s34, 0
      %p222 = por %p220, %p221
      %s223 = ssub.s32 %s35, %s47
      %s224 = ssub.s32 %s36, %s43
      %s225 = sor.u32 %s223, %s224
      %p226 = scmp.eq.s32.totalorder %s225, 0
      %s228 = sadd.s32 %s227, 1
      %s229 = scalar_select %p226, %s227, %s228
      %p232 = pneg %p226
      %p233 = scmp.eq.s32.totalorder %s28, 1
      %p234 = por %p232, %p233
      %p235 = scmp.ne.s32.totalorder %s227, %s230
      %p236 = scmp.eq.s32.totalorder %s28, 0
      %p237 = por %p235, %p236
      %p238 = scmp.ne.s32.totalorder %s227, %s230
      %p239 = scmp.eq.s32.totalorder %s33, 1
      %p240 = por %p238, %p239
      %p241 = scmp.ne.s32.totalorder %s230, %s231
      %p242 = scmp.eq.s32.totalorder %s33, 0
      %p243 = por %p241, %p242
      %p244 = scmp.ne.s32.totalorder %s230, %s231
      %p245 = scmp.eq.s32.totalorder %s34, 1
      %p246 = por %p244, %p245
      %p248 = scmp.ne.s32.totalorder %s231, %s247
      %p249 = scmp.eq.s32.totalorder %s34, 0
      %p250 = por %p248, %p249
      %s251 = ssub.s32 %s35, %s47
      %s252 = ssub.s32 %s36, %s43
      %s253 = sor.u32 %s251, %s252
      %p254 = scmp.eq.s32.totalorder %s253, 0
      %s256 = sadd.s32 %s255, 1
      %s257 = scalar_select %p254, %s255, %s256
      %p260 = pneg %p254
      %p261 = scmp.eq.s32.totalorder %s28, 1
      %p262 = por %p260, %p261
      %p263 = scmp.ne.s32.totalorder %s255, %s258
      %p264 = scmp.eq.s32.totalorder %s28, 0
      %p265 = por %p263, %p264
      %p266 = scmp.ne.s32.totalorder %s255, %s258
      %p267 = scmp.eq.s32.totalorder %s33, 1
      %p268 = por %p266, %p267
      %p269 = scmp.ne.s32.totalorder %s258, %s259
      %p270 = scmp.eq.s32.totalorder %s33, 0
      %p271 = por %p269, %p270
      %p272 = scmp.ne.s32.totalorder %s258, %s259
      %p273 = scmp.eq.s32.totalorder %s34, 1
      %p274 = por %p272, %p273
      %p276 = scmp.ne.s32.totalorder %s259, %s275
      %p277 = scmp.eq.s32.totalorder %s34, 0
      %p278 = por %p276, %p277
      %s279 = ssub.s32 %s35, %s47
      %s280 = ssub.s32 %s36, %s43
      %s281 = sor.u32 %s279, %s280
      %p282 = scmp.eq.s32.totalorder %s281, 0
      %s284 = sadd.s32 %s283, 1
      %s285 = scalar_select %p282, %s283, %s284
      %p288 = pneg %p282
      %p289 = scmp.eq.s32.totalorder %s28, 1
      %p290 = por %p288, %p289
      %p291 = scmp.ne.s32.totalorder %s283, %s286
      %p292 = scmp.eq.s32.totalorder %s28, 0
      %p293 = por %p291, %p292
      %p294 = scmp.ne.s32.totalorder %s283, %s286
      %p295 = scmp.eq.s32.totalorder %s33, 1
      %p296 = por %p294, %p295
      %p297 = scmp.ne.s32.totalorder %s286, %s287
      %p298 = scmp.eq.s32.totalorder %s33, 0
      %p299 = por %p297, %p298
      %p300 = scmp.ne.s32.totalorder %s286, %s287
      %p301 = scmp.eq.s32.totalorder %s34, 1
      %p302 = por %p300, %p301
      %p304 = scmp.ne.s32.totalorder %s287, %s303
      %p305 = scmp.eq.s32.totalorder %s34, 0
      %p306 = por %p304, %p305
      %s307 = ssub.s32 %s35, %s47
      %s308 = ssub.s32 %s36, %s43
      %s309 = sor.u32 %s307, %s308
      %p310 = scmp.eq.s32.totalorder %s309, 0
      %s312 = sadd.s32 %s311, 1
      %s313 = scalar_select %p310, %s311, %s312
      %p316 = pneg %p310
      %p317 = scmp.eq.s32.totalorder %s28, 1
      %p318 = por %p316, %p317
      %p319 = scmp.ne.s32.totalorder %s311, %s314
      %p320 = scmp.eq.s32.totalorder %s28, 0
      %p321 = por %p319, %p320
      %p322 = scmp.ne.s32.totalorder %s311, %s314
      %p323 = scmp.eq.s32.totalorder %s33, 1
      %p324 = por %p322, %p323
      %p325 = scmp.ne.s32.totalorder %s314, %s315
      %p326 = scmp.eq.s32.totalorder %s33, 0
      %p327 = por %p325, %p326
      %p328 = scmp.ne.s32.totalorder %s314, %s315
      %p329 = scmp.eq.s32.totalorder %s34, 1
      %p330 = por %p328, %p329
      %p332 = scmp.ne.s32.totalorder %s315, %s331
      %p333 = scmp.eq.s32.totalorder %s34, 0
      %p334 = por %p332, %p333
      %s335 = ssub.s32 %s35, %s47
      %s336 = ssub.s32 %s36, %s43
      %s337 = sor.u32 %s335, %s336
      %p338 = scmp.eq.s32.totalorder %s337, 0
      %s340 = sadd.s32 %s339, 1
      %s341 = scalar_select %p338, %s339, %s340
      %p344 = pneg %p338
      %p345 = scmp.eq.s32.totalorder %s28, 1
      %p346 = por %p344, %p345
      %p347 = scmp.ne.s32.totalorder %s339, %s342
      %p348 = scmp.eq.s32.totalorder %s28, 0
      %p349 = por %p347, %p348
      %p350 = scmp.ne.s32.totalorder %s339, %s342
      %p351 = scmp.eq.s32.totalorder %s33, 1
      %p352 = por %p350, %p351
      %p353 = scmp.ne.s32.totalorder %s342, %s343
      %p354 = scmp.eq.s32.totalorder %s33, 0
      %p355 = por %p353, %p354
      %p356 = scmp.ne.s32.totalorder %s342, %s343
      %p357 = scmp.eq.s32.totalorder %s34, 1
      %p358 = por %p356, %p357
      %p360 = scmp.ne.s32.totalorder %s343, %s359
      %p361 = scmp.eq.s32.totalorder %s34, 0
      %p362 = por %p360, %p361
      %p363 = scmp.le.s32.totalorder 1, %s28
      %p364 = scmp.lt.s32.totalorder %s28, 3
      %p365 = pnand %p363, %p364
      %p366 = pneg %p365
      // Predicated region
      $region9: #{tpu_custom_call.1} parent=5 // pred_check
        _
      $region10: #{tpu_custom_call.1} parent=5 // pred_check_branch
        %368 = sbr.rel (%p365) target = $region12
      $region11: #{tpu_custom_call.1} parent=5 // pred_region
        %s369 = ssub.s32 %s28, 1
        // Predicated region
        $region13: #{tpu_custom_call.1} parent=11 // pred_check
          %p370 = pneg %p89
        $region14: #{tpu_custom_call.1} parent=11 // pred_check_branch
          %372 = sbr.rel (%p370) target = $region16
        $region15: #{tpu_custom_call.1} parent=11 // pred_region
          _
        $region16: #{tpu_custom_call.1} parent=11 // pred_fallthru
          _
        // Predicated region
        $region17: #{tpu_custom_call.1} parent=11 // pred_check
          %p373 = pneg %p110
        $region18: #{tpu_custom_call.1} parent=11 // pred_check_branch
          %375 = sbr.rel (%p373) target = $region20
        $region19: #{tpu_custom_call.1} parent=11 // pred_region
          _
        $region20: #{tpu_custom_call.1} parent=11 // pred_fallthru
          _
        // Predicated region
        $region21: #{tpu_custom_call.1} parent=11 // pred_check
          %p376 = pneg %p131
        $region22: #{tpu_custom_call.1} parent=11 // pred_check_branch
          %378 = sbr.rel (%p376) target = $region24
        $region23: #{tpu_custom_call.1} parent=11 // pred_region
          _
        $region24: #{tpu_custom_call.1} parent=11 // pred_fallthru
          _
        // Predicated region
        $region25: #{tpu_custom_call.1} parent=11 // pred_check
          %p379 = pneg %p152
        $region26: #{tpu_custom_call.1} parent=11 // pred_check_branch
          %381 = sbr.rel (%p379) target = $region28
        $region27: #{tpu_custom_call.1} parent=11 // pred_region
          _
        $region28: #{tpu_custom_call.1} parent=11 // pred_fallthru
          _
        // Predicated region
        $region29: #{tpu_custom_call.1} parent=11 // pred_check
          %p382 = pneg %p173
        $region30: #{tpu_custom_call.1} parent=11 // pred_check_branch
          %384 = sbr.rel (%p382) target = $region32
        $region31: #{tpu_custom_call.1} parent=11 // pred_region
          _
        $region32: #{tpu_custom_call.1} parent=11 // pred_fallthru
          _
        // Predicated region
        $region33: #{tpu_custom_call.1} parent=11 // pred_check
          %p385 = pneg %p194
        $region34: #{tpu_custom_call.1} parent=11 // pred_check_branch
          %387 = sbr.rel (%p385) target = $region36
        $region35: #{tpu_custom_call.1} parent=11 // pred_region
          _
        $region36: #{tpu_custom_call.1} parent=11 // pred_fallthru
          _
        // Predicated region
        $region37: #{tpu_custom_call.1} parent=11 // pred_check
          %p388 = pneg %p215
        $region38: #{tpu_custom_call.1} parent=11 // pred_check_branch
          %390 = sbr.rel (%p388) target = $region40
        $region39: #{tpu_custom_call.1} parent=11 // pred_region
          _
        $region40: #{tpu_custom_call.1} parent=11 // pred_fallthru
          _
      $region12: #{tpu_custom_call.1} parent=5 // pred_fallthru
        _
      %p391 = scmp.lt.s32.totalorder %s28, 2
      // Predicated region
      $region41: #{tpu_custom_call.1} parent=5 // pred_check
        %p392 = pneg %p391
      $region42: #{tpu_custom_call.1} parent=5 // pred_check_branch
        %394 = sbr.rel (%p392) target = $region44
      $region43: #{tpu_custom_call.1} parent=5 // pred_region
        // Predicated region
        $region45: #{tpu_custom_call.1} parent=43 // pred_check
          %p395 = pneg %p62
        $region46: #{tpu_custom_call.1} parent=43 // pred_check_branch
          %397 = sbr.rel (%p395) target = $region48
        $region47: #{tpu_custom_call.1} parent=43 // pred_region
          %p398 = scmp.lt.s32.totalorder %s35, 1
          %s399 = scalar_select %p398, %s35, 1
          %p400 = scmp.lt.s32.totalorder %s36, 0
          %s401 = scalar_select %p400, %s36, 0
          %s402 = sadd.s32 %s401, %s399
          %s403 = smul.addr %s402, 8
          %s404 = scalar_lea.vmem %s0, %s403
        $region48: #{tpu_custom_call.1} parent=43 // pred_fallthru
          _
      $region44: #{tpu_custom_call.1} parent=5 // pred_fallthru
        _
      %p405 = scmp.le.s32.totalorder 1, %s28
      %p406 = scmp.lt.s32.totalorder %s28, 3
      %p407 = pnand %p405, %p406
      %p408 = pneg %p407
      // Predicated region
      $region49: #{tpu_custom_call.1} parent=5 // pred_check
        _
      $region50: #{tpu_custom_call.1} parent=5 // pred_check_branch
        %410 = sbr.rel (%p407) target = $region52
      $region51: #{tpu_custom_call.1} parent=5 // pred_region
        %s411 = ssub.s32 %s28, 1
        %p412 = scmp.lt.s32.totalorder %s37, 1
        %s413 = scalar_select %p412, %s37, 1
        %p414 = scmp.lt.s32.totalorder %s38, 0
        %s415 = scalar_select %p414, %s38, 0
        %s416 = sadd.s32 %s415, %s413
        %s417 = smul.addr %s416, 8
        %s418 = scalar_lea.vmem %s0, %s417
        %p419 = pneg %p68
        %p420 = pneg %p65
        %p421 = pneg %p89
        %p422 = pneg %p86
        %p423 = pneg %p110
        %p424 = pneg %p107
        %p425 = pneg %p131
        %p426 = pneg %p128
        %p427 = pneg %p152
        %p428 = pneg %p149
        %p429 = pneg %p173
        %p430 = pneg %p170
        %p431 = pneg %p194
        %p432 = pneg %p191
        %p433 = pneg %p215
        %p434 = pneg %p212
        %p435 = pneg %p243
        %p436 = pneg %p240
        %s437 = sand.u32 %s230, 1
        %s438 = scalar_lea.sflag [#allocation3], %s437
        %s439 = sand.u32 %s230, 1
        %s440 = smul.addr %s439, 8
        %s441 = scalar_lea.vmem [#allocation2], %s440
        %p442 = pneg %p271
        %p443 = pneg %p268
        %s444 = sand.u32 %s33, 1
        %s445 = scalar_lea.sflag [#allocation5], %s444
        %s446 = sand.u32 %s258, 1
        %s447 = smul.addr %s446, 8
        %s448 = scalar_lea.vmem [#allocation4], %s447
        %p449 = pneg %p299
        %p450 = pneg %p296
        %s451 = sand.u32 %s33, 1
        %s452 = scalar_lea.sflag [#allocation5], %s451
        %s453 = sand.u32 %s286, 1
        %s454 = smul.addr %s453, 8
        %s455 = scalar_lea.vmem [#allocation6], %s454
        %p456 = pneg %p327
        %p457 = pneg %p324
        %s458 = sand.u32 %s314, 1
        %s459 = scalar_lea.sflag [#allocation8], %s458
        %s460 = sand.u32 %s314, 1
        %s461 = scalar_lea.vmem [#allocation7], %s460
        %p462 = pneg %p355
        %p463 = pneg %p352
        %p464 = scmp.lt.s32.totalorder %s37, 1
        %s465 = scalar_select %p464, %s37, 1
        %p466 = scmp.lt.s32.totalorder %s38, 0
        %s467 = scalar_select %p466, %s38, 0
        %s468 = sadd.s32 %s467, %s465
        %s469 = scalar_lea.vmem %s12, %s468
        %p470 = scmp.lt.s32.totalorder %s37, 1
        %s471 = scalar_select %p470, %s37, 1
        %p472 = scmp.lt.s32.totalorder %s38, 0
        %s473 = scalar_select %p472, %s38, 0
        %s474 = sadd.s32 %s473, %s471
        %s475 = smul.addr %s474, 8
        %s476 = scalar_lea.vmem %s0, %s475
        %p477 = scmp.lt.s32.totalorder %s37, 1
        %s478 = scalar_select %p477, %s37, 1
        %p479 = scmp.lt.s32.totalorder %s38, 0
        %s480 = scalar_select %p479, %s38, 0
        %s481 = sadd.s32 %s480, %s478
        %s482 = scalar_lea.vmem %s12, %s481
        %v484 = vld [vmem:[%s476] sm:$0xff]
        %v485 = vld [vmem:[%s1] sm:$0xff]
        %v486 = vld [vmem:[%s1 + $0x8] sm:$0xff]
        %v487 = vld [vmem:[%s1 + $0x10] sm:$0xff]
        %v488 = vld [vmem:[%s1 + $0x18] sm:$0xff]
        %v489 = vld [vmem:[%s2] sm:$0x1]
        %v491 = vlaneseq
        %v492 = vshrl.u32 %v491, 7
        %v493 = vsub.s32 0, %v492
        %v494 = vrot.slane %v489, %v493
        %vm496 = vcmask 261120
        %v498 = vsel %vm496, %v484, 0
        %500 = vmatprep.subr.mxu0 0.0
        %501 = vmatpush1.msra.mxu0 %v485
        %502 = vmatprep.subr.mxu0 0.0
        %503 = vmatpush1.msra.mxu0 %v486
        %504 = vmatprep.subr.mxu0 0.0
        %505 = vmatpush1.msra.mxu0 %v487
        %506 = vmatprep.subr.mxu0 0.0
        %507 = vmatpush1.msra.mxu0 %v488
        %508 = vmatprep.subr.mxu0 0.0
        %509 = vmatpush1.msra.mxu0 0.0
        %510 = vmatprep.subr.mxu0 0.0
        %511 = vmatpush1.msra.mxu0 0.0
        %512 = vmatprep.subr.mxu0 0.0
        %513 = vmatpush1.msra.mxu0 0.0
        %514 = vmatprep.subr.mxu0 0.0
        %515 = vmatpush1.msra.mxu0 0.0
        %516 = vmatprep.subr.mxu0 0.0
        %517 = vmatpush1.msra.mxu0 0.0
        %518 = vmatprep.subr.mxu0 0.0
        %519 = vmatpush1.msra.mxu0 0.0
        %520 = vmatprep.subr.mxu0 0.0
        %521 = vmatpush1.msra.mxu0 0.0
        %522 = vmatprep.subr.mxu0 0.0
        %523 = vmatpush1.msra.mxu0 0.0
        %524 = vmatprep.subr.mxu0 0.0
        %525 = vmatpush1.msra.mxu0 0.0
        %526 = vmatprep.subr.mxu0 0.0
        %527 = vmatpush1.msra.mxu0 0.0
        %528 = vmatprep.subr.mxu0 0.0
        %529 = vmatpush1.msra.mxu0 0.0
        %530 = vmatprep.subr.mxu0 0.0
        %531 = vmatpush1.msra.mxu0 0.0
        %532 = vmatprep.subr.mxu0 0.0
        %533 = vmatpush1.msra.mxu0 0.0
        %534 = vmatprep.subr.mxu0 0.0
        %535 = vmatpush1.msra.mxu0 0.0
        %536 = vmatprep.subr.mxu0 0.0
        %537 = vmatpush1.msra.mxu0 0.0
        %538 = vmatprep.subr.mxu0 0.0
        %539 = vmatpush1.msra.mxu0 0.0
        %540 = vmatprep.subr.mxu0 0.0
        %541 = vmatpush1.msra.mxu0 0.0
        %542 = vmatprep.subr.mxu0 0.0
        %543 = vmatpush1.msra.mxu0 0.0
        %544 = vmatprep.subr.mxu0 0.0
        %545 = vmatpush1.msra.mxu0 0.0
        %546 = vmatprep.subr.mxu0 0.0
        %547 = vmatpush1.msra.mxu0 0.0
        %548 = vmatprep.subr.mxu0 0.0
        %549 = vmatpush1.msra.mxu0 0.0
        %550 = vmatprep.subr.mxu0 0.0
        %551 = vmatpush1.msra.mxu0 0.0
        %552 = vmatprep.subr.mxu0 0.0
        %553 = vmatpush1.msra.mxu0 0.0
        %554 = vmatprep.subr.mxu0 0.0
        %555 = vmatpush1.msra.mxu0 0.0
        %556 = vmatprep.subr.mxu0 0.0
        %557 = vmatpush1.msra.mxu0 0.0
        %558 = vmatprep.subr.mxu0 0.0
        %559 = vmatpush1.msra.mxu0 0.0
        %560 = vmatprep.subr.mxu0 0.0
        %561 = vmatpush1.msra.mxu0 0.0
        %562 = vmatprep.subr.mxu0 0.0
        %563 = vmatpush1.msra.mxu0 0.0
        %564 = vmatprep.mubr.f32.mxu0 0.0
        %565 = vmatmul.mubr.f32.gmra.mrb[0].mxu0 %v498
        %v566 = vpop.f32.mrb[0].mxu0
        %v567 = vadd.f32 %v494, %v566
        %v568 = vpop.f32.mrb[0].mxu0
        %569 = vdwg.mxu0
        %vm570 = vcmask 130048
        %571 = vst.msk [vmem:[%s441] sm:$0xff] %vm570, %v567
        %v572 = vmul.f32 %v567, %v567
        %573 = vadd.xlane.f32.xlu0 %v572
        %v574 = vpop.xlane.xlu0 %573
        %v575 = vmax.f32 %v574, 1e-24
        %v576 = vrsqrt.pop %v575
        %v577 = vmul.f32 %v567, %v576
        %v578 = vpack.c.bf16 %v577, %v577
        %v579 = vld [vmem:[%s3] sm:$0xf]
        %v580 = vld [vmem:[%s3 + $0x4] sm:$0xf]
        %v581 = vld [vmem:[%s3 + $0x8] sm:$0xf]
        %v582 = vld [vmem:[%s3 + $0xc] sm:$0xf]
        %v583 = vld [vmem:[%s3 + $0x10] sm:$0xf]
        %v584 = vld [vmem:[%s3 + $0x14] sm:$0xf]
        %v585 = vld [vmem:[%s3 + $0x18] sm:$0xf]
        %v586 = vld [vmem:[%s3 + $0x1c] sm:$0xf]
        %v587 = vld [vmem:[%s3 + $0x20] sm:$0xf]
        %v588 = vld [vmem:[%s3 + $0x24] sm:$0xf]
        %v589 = vld [vmem:[%s3 + $0x28] sm:$0xf]
        %v590 = vld [vmem:[%s3 + $0x2c] sm:$0xf]
        %v591 = vld [vmem:[%s3 + $0x30] sm:$0xf]
        %v592 = vld [vmem:[%s3 + $0x34] sm:$0xf]
        %v593 = vld [vmem:[%s3 + $0x38] sm:$0xf]
        %v594 = vld [vmem:[%s3 + $0x3c] sm:$0xf]
        %v611 = vunpack.c.l.b16 %v579
        %v612 = vunpack.c.l.b16 %v580
        %v613 = vunpack.c.l.b16 %v581
        %v614 = vunpack.c.l.b16 %v582
        %v615 = vunpack.c.l.b16 %v583
        %v616 = vunpack.c.l.b16 %v584
        %v617 = vunpack.c.l.b16 %v585
        %v618 = vunpack.c.l.b16 %v586
        %v619 = vunpack.c.l.b16 %v587
        %v620 = vunpack.c.l.b16 %v588
        %v621 = vunpack.c.l.b16 %v589
        %v622 = vunpack.c.l.b16 %v590
        %v623 = vunpack.c.l.b16 %v591
        %v624 = vunpack.c.l.b16 %v592
        %v625 = vunpack.c.l.b16 %v593
        %v626 = vunpack.c.l.b16 %v594
        %v627 = vpack.c.b16 %v612, %v611
        %v628 = vpack.c.b16 %v614, %v613
        %v629 = vpack.c.b16 %v616, %v615
        %v630 = vpack.c.b16 %v618, %v617
        %v631 = vpack.c.b16 %v620, %v619
        %v632 = vpack.c.b16 %v622, %v621
        %v633 = vpack.c.b16 %v624, %v623
        %v634 = vpack.c.b16 %v626, %v625
        %643 = vmatprep.subr.bf16.mxu0 0
        %644 = vmatpush1.bf16.msra.mxu0 %v627
        %645 = vmatprep.subr.bf16.mxu0 0
        %646 = vmatpush1.bf16.msra.mxu0 %v628
        %647 = vmatprep.subr.bf16.mxu0 0
        %648 = vmatpush1.bf16.msra.mxu0 %v629
        %649 = vmatprep.subr.bf16.mxu0 0
        %650 = vmatpush1.bf16.msra.mxu0 %v630
        %651 = vmatprep.subr.bf16.mxu0 0
        %652 = vmatpush1.bf16.msra.mxu0 %v631
        %653 = vmatprep.subr.bf16.mxu0 0
        %654 = vmatpush1.bf16.msra.mxu0 %v632
        %655 = vmatprep.subr.bf16.mxu0 0
        %656 = vmatpush1.bf16.msra.mxu0 %v633
        %657 = vmatprep.subr.bf16.mxu0 0
        %658 = vmatpush1.bf16.msra.mxu0 %v634
        %659 = vmatprep.subr.bf16.mxu0 0
        %660 = vmatpush1.bf16.msra.mxu0 0
        %661 = vmatprep.subr.bf16.mxu0 0
        %662 = vmatpush1.bf16.msra.mxu0 0
        %663 = vmatprep.subr.bf16.mxu0 0
        %664 = vmatpush1.bf16.msra.mxu0 0
        %665 = vmatprep.subr.bf16.mxu0 0
        %666 = vmatpush1.bf16.msra.mxu0 0
        %667 = vmatprep.subr.bf16.mxu0 0
        %668 = vmatpush1.bf16.msra.mxu0 0
        %669 = vmatprep.subr.bf16.mxu0 0
        %670 = vmatpush1.bf16.msra.mxu0 0
        %671 = vmatprep.subr.bf16.mxu0 0
        %672 = vmatpush1.bf16.msra.mxu0 0
        %673 = vmatprep.subr.bf16.mxu0 0
        %674 = vmatpush1.bf16.msra.mxu0 0
        %675 = vmatprep.mubr.bf16.mxu0 0
        %676 = vmatmul.mubr.bf16.gmra.mrb[0].mxu0 %v578
        %v677 = vpop.f32.mrb[0].mxu0
        %v678 = vadd.f32 0.0, %v677
        %v679 = vpop.f32.mrb[0].mxu0
        %v680 = vpop.f32.mrb[0].mxu0
        %v681 = vpop.f32.mrb[0].mxu0
        %682 = vdwg.mxu0
        %v683 = vlaneseq
        %v684 = vand.u32 %v683, 127
        %vm685 = vcmask 523264
        %v686 = vsel %vm685, %v678, -inf
        %687 = vmax.xlane.f32.xlu0 %v686
        %v688 = vpop.xlane.xlu0 %687
        %vm689 = vcmp.eq.f32.partialorder %v678, %v688
        %v690 = vsel %vm689, %v684, 64
        %v691 = vsel %vm685, %v690, 2147483647
        %v692 = vand.u32 %v691, 65535
        %v693 = vshra.s32 %v691, 16
        %v694 = vcvt.s32.f32 %v692
        %v695 = vcvt.s32.f32 %v693
        %696 = vmin.xlane.f32.xlu0 %v695
        %v697 = vpop.xlane.xlu0 %696
        %vm698 = vcmp.eq.f32.partialorder %v695, %v697
        %v699 = vsel %vm698, %v694, inf
        %700 = vmin.xlane.f32.xlu0 %v699
        %v701 = vpop.xlane.xlu0 %700
        %v702 = vcvt.f32.s32 %v701
        %v703 = vcvt.f32.s32 %v697
        %v704 = vshll.u32 %v703, 16
        %v705 = vadd.s32 %v704, %v702
        %v706 = vlaneseq
        %v707 = vshrl.u32 %v706, 7
        %v708 = vsub.s32 %v684, %v707
        %v709 = vrot.slane %v705, %v708
        %vm710 = vcmask 57344
        %711 = vst.msk [vmem:[%s461] sm:$0x1] %vm710, %v709
        %vm712 = vcmp.eq.s32.totalorder %v684, %v705
        %v713 = vsel %vm712, 1, 0
        %v714 = vcvt.s32.f32 %v713
        %v715 = vpack.c.bf16 %v714, %v714
        %v716 = vld [vmem:[%s4] sm:$0xf]
        %v717 = vld [vmem:[%s4 + $0x4] sm:$0xf]
        %v718 = vld [vmem:[%s4 + $0x8] sm:$0xf]
        %v719 = vld [vmem:[%s4 + $0xc] sm:$0xf]
        %v720 = vld [vmem:[%s4 + $0x10] sm:$0xf]
        %v721 = vld [vmem:[%s4 + $0x14] sm:$0xf]
        %v722 = vld [vmem:[%s4 + $0x18] sm:$0xf]
        %v723 = vld [vmem:[%s4 + $0x1c] sm:$0xf]
        %v724 = vld [vmem:[%s5] sm:$0xf]
        %v725 = vld [vmem:[%s5 + $0x4] sm:$0xf]
        %v726 = vld [vmem:[%s5 + $0x8] sm:$0xf]
        %v727 = vld [vmem:[%s5 + $0xc] sm:$0xf]
        %v728 = vld [vmem:[%s5 + $0x10] sm:$0xf]
        %v729 = vld [vmem:[%s5 + $0x14] sm:$0xf]
        %v730 = vld [vmem:[%s5 + $0x18] sm:$0xf]
        %v731 = vld [vmem:[%s5 + $0x1c] sm:$0xf]
        %v740 = vunpack.c.l.b16 %v724
        %v741 = vunpack.c.l.b16 %v725
        %v742 = vunpack.c.l.b16 %v726
        %v743 = vunpack.c.l.b16 %v727
        %v744 = vunpack.c.l.b16 %v728
        %v745 = vunpack.c.l.b16 %v729
        %v746 = vunpack.c.l.b16 %v730
        %v747 = vunpack.c.l.b16 %v731
        %v748 = vpack.c.b16 %v741, %v740
        %v749 = vpack.c.b16 %v743, %v742
        %v750 = vpack.c.b16 %v745, %v744
        %v751 = vpack.c.b16 %v747, %v746
        %v757 = vsel %vm685, %v715, 0
        %759 = vmatprep.subr.bf16.mxu0 0
        %760 = vmatpush1.bf16.msra.mxu0 %v748
        %761 = vmatprep.subr.bf16.mxu0 0
        %762 = vmatpush1.bf16.msra.mxu0 %v749
        %763 = vmatprep.subr.bf16.mxu0 0
        %764 = vmatpush1.bf16.msra.mxu0 %v750
        %765 = vmatprep.subr.bf16.mxu0 0
        %766 = vmatpush1.bf16.msra.mxu0 %v751
        %767 = vmatprep.subr.bf16.mxu0 0
        %768 = vmatpush1.bf16.msra.mxu0 0
        %769 = vmatprep.subr.bf16.mxu0 0
        %770 = vmatpush1.bf16.msra.mxu0 0
        %771 = vmatprep.subr.bf16.mxu0 0
        %772 = vmatpush1.bf16.msra.mxu0 0
        %773 = vmatprep.subr.bf16.mxu0 0
        %774 = vmatpush1.bf16.msra.mxu0 0
        %775 = vmatprep.subr.bf16.mxu0 0
        %776 = vmatpush1.bf16.msra.mxu0 0
        %777 = vmatprep.subr.bf16.mxu0 0
        %778 = vmatpush1.bf16.msra.mxu0 0
        %779 = vmatprep.subr.bf16.mxu0 0
        %780 = vmatpush1.bf16.msra.mxu0 0
        %781 = vmatprep.subr.bf16.mxu0 0
        %782 = vmatpush1.bf16.msra.mxu0 0
        %783 = vmatprep.subr.bf16.mxu0 0
        %784 = vmatpush1.bf16.msra.mxu0 0
        %785 = vmatprep.subr.bf16.mxu0 0
        %786 = vmatpush1.bf16.msra.mxu0 0
        %787 = vmatprep.subr.bf16.mxu0 0
        %788 = vmatpush1.bf16.msra.mxu0 0
        %789 = vmatprep.subr.bf16.mxu0 0
        %790 = vmatpush1.bf16.msra.mxu0 0
        %791 = vmatprep.mubr.bf16.mxu0 0
        %792 = vmatmul.mubr.bf16.gmra.mrb[0].mxu0 %v757
        %v793 = vpop.f32.mrb[0].mxu0
        %v794 = vadd.f32 0.0, %v793
        %v795 = vpop.f32.mrb[0].mxu0
        %v796 = vpop.f32.mrb[0].mxu0
        %v797 = vpop.f32.mrb[0].mxu0
        %798 = vdwg.mxu0
        %v807 = vunpack.c.l.b16 %v716
        %v808 = vunpack.c.l.b16 %v717
        %v809 = vunpack.c.l.b16 %v718
        %v810 = vunpack.c.l.b16 %v719
        %v811 = vunpack.c.l.b16 %v720
        %v812 = vunpack.c.l.b16 %v721
        %v813 = vunpack.c.l.b16 %v722
        %v814 = vunpack.c.l.b16 %v723
        %v815 = vpack.c.b16 %v808, %v807
        %v816 = vpack.c.b16 %v810, %v809
        %v817 = vpack.c.b16 %v812, %v811
        %v818 = vpack.c.b16 %v814, %v813
        %823 = vmatprep.subr.bf16.mxu0 0
        %824 = vmatpush1.bf16.msra.mxu0 %v815
        %825 = vmatprep.subr.bf16.mxu0 0
        %826 = vmatpush1.bf16.msra.mxu0 %v816
        %827 = vmatprep.subr.bf16.mxu0 0
        %828 = vmatpush1.bf16.msra.mxu0 %v817
        %829 = vmatprep.subr.bf16.mxu0 0
        %830 = vmatpush1.bf16.msra.mxu0 %v818
        %831 = vmatprep.subr.bf16.mxu0 0
        %832 = vmatpush1.bf16.msra.mxu0 0
        %833 = vmatprep.subr.bf16.mxu0 0
        %834 = vmatpush1.bf16.msra.mxu0 0
        %835 = vmatprep.subr.bf16.mxu0 0
        %836 = vmatpush1.bf16.msra.mxu0 0
        %837 = vmatprep.subr.bf16.mxu0 0
        %838 = vmatpush1.bf16.msra.mxu0 0
        %839 = vmatprep.subr.bf16.mxu0 0
        %840 = vmatpush1.bf16.msra.mxu0 0
        %841 = vmatprep.subr.bf16.mxu0 0
        %842 = vmatpush1.bf16.msra.mxu0 0
        %843 = vmatprep.subr.bf16.mxu0 0
        %844 = vmatpush1.bf16.msra.mxu0 0
        %845 = vmatprep.subr.bf16.mxu0 0
        %846 = vmatpush1.bf16.msra.mxu0 0
        %847 = vmatprep.subr.bf16.mxu0 0
        %848 = vmatpush1.bf16.msra.mxu0 0
        %849 = vmatprep.subr.bf16.mxu0 0
        %850 = vmatpush1.bf16.msra.mxu0 0
        %851 = vmatprep.subr.bf16.mxu0 0
        %852 = vmatpush1.bf16.msra.mxu0 0
        %853 = vmatprep.subr.bf16.mxu0 0
        %854 = vmatpush1.bf16.msra.mxu0 0
        %855 = vmatprep.mubr.bf16.mxu0 0
        %856 = vmatmul.mubr.bf16.gmra.mrb[0].mxu0 %v757
        %v857 = vpop.f32.mrb[0].mxu0
        %v858 = vadd.f32 %v794, %v857
        %v859 = vpop.f32.mrb[0].mxu0
        %v860 = vpop.f32.mrb[0].mxu0
        %v861 = vpop.f32.mrb[0].mxu0
        %862 = vdwg.mxu0
        %863 = vst.msk [vmem:[%s448] sm:$0xff] %vm570, %v858
        %v864 = vsub.f32 %v858, %v567
        %v865 = vmul.f32 %v864, %v864
        %866 = vadd.xlane.f32.xlu0 %v865
        %v867 = vpop.xlane.xlu0 %866
        %v868 = vrot.slane %v867, 4
        %v869 = vadd.f32 %v867, %v868
        %v870 = vrot.slane %v869, 2
        %v871 = vadd.f32 %v869, %v870
        %v872 = vrot.slane %v871, 1
        %v873 = vadd.f32 %v871, %v872
        %s874 = vtos %v873
        %v875 = vstv %s874
        %vm876 = vcmask 0
        %877 = vst.msk [vmem:[%s482] sm:$0x1] %vm876, %v875
        %v878 = vld [vmem:[%s6] sm:$0xff]
        %v879 = vld [vmem:[%s6 + $0x8] sm:$0xff]
        %v880 = vld [vmem:[%s6 + $0x10] sm:$0xff]
        %v881 = vld [vmem:[%s6 + $0x18] sm:$0xff]
        %v882 = vld [vmem:[%s6 + $0x20] sm:$0xff]
        %v883 = vld [vmem:[%s6 + $0x28] sm:$0xff]
        %v884 = vld [vmem:[%s6 + $0x30] sm:$0xff]
        %v885 = vld [vmem:[%s6 + $0x38] sm:$0xff]
        %v886 = vld [vmem:[%s6 + $0x40] sm:$0xff]
        %v887 = vld [vmem:[%s6 + $0x48] sm:$0xff]
        %v888 = vld [vmem:[%s6 + $0x50] sm:$0xff]
        %v889 = vld [vmem:[%s6 + $0x58] sm:$0xff]
        %v890 = vld [vmem:[%s6 + $0x60] sm:$0xff]
        %v891 = vld [vmem:[%s6 + $0x68] sm:$0xff]
        %v892 = vld [vmem:[%s6 + $0x70] sm:$0xff]
        %v893 = vld [vmem:[%s6 + $0x78] sm:$0xff]
        %v894 = vld [vmem:[%s7] sm:$0x1]
        %v896 = vlaneseq
        %v897 = vshrl.u32 %v896, 7
        %v898 = vsub.s32 0, %v897
        %v899 = vrot.slane %v894, %v898
        %901 = vmatprep.subr.mxu0 0.0
        %902 = vmatpush1.msra.mxu0 %v878
        %903 = vmatprep.subr.mxu0 0.0
        %904 = vmatpush1.msra.mxu0 %v879
        %905 = vmatprep.subr.mxu0 0.0
        %906 = vmatpush1.msra.mxu0 %v880
        %907 = vmatprep.subr.mxu0 0.0
        %908 = vmatpush1.msra.mxu0 %v881
        %909 = vmatprep.subr.mxu0 0.0
        %910 = vmatpush1.msra.mxu0 %v882
        %911 = vmatprep.subr.mxu0 0.0
        %912 = vmatpush1.msra.mxu0 %v883
        %913 = vmatprep.subr.mxu0 0.0
        %914 = vmatpush1.msra.mxu0 %v884
        %915 = vmatprep.subr.mxu0 0.0
        %916 = vmatpush1.msra.mxu0 %v885
        %917 = vmatprep.subr.mxu0 0.0
        %918 = vmatpush1.msra.mxu0 %v886
        %919 = vmatprep.subr.mxu0 0.0
        %920 = vmatpush1.msra.mxu0 %v887
        %921 = vmatprep.subr.mxu0 0.0
        %922 = vmatpush1.msra.mxu0 %v888
        %923 = vmatprep.subr.mxu0 0.0
        %924 = vmatpush1.msra.mxu0 %v889
        %925 = vmatprep.subr.mxu0 0.0
        %926 = vmatpush1.msra.mxu0 %v890
        %927 = vmatprep.subr.mxu0 0.0
        %928 = vmatpush1.msra.mxu0 %v891
        %929 = vmatprep.subr.mxu0 0.0
        %930 = vmatpush1.msra.mxu0 %v892
        %931 = vmatprep.subr.mxu0 0.0
        %932 = vmatpush1.msra.mxu0 %v893
        %933 = vmatprep.subr.mxu0 0.0
        %934 = vmatpush1.msra.mxu0 0.0
        %935 = vmatprep.subr.mxu0 0.0
        %936 = vmatpush1.msra.mxu0 0.0
        %937 = vmatprep.subr.mxu0 0.0
        %938 = vmatpush1.msra.mxu0 0.0
        %939 = vmatprep.subr.mxu0 0.0
        %940 = vmatpush1.msra.mxu0 0.0
        %941 = vmatprep.subr.mxu0 0.0
        %942 = vmatpush1.msra.mxu0 0.0
        %943 = vmatprep.subr.mxu0 0.0
        %944 = vmatpush1.msra.mxu0 0.0
        %945 = vmatprep.subr.mxu0 0.0
        %946 = vmatpush1.msra.mxu0 0.0
        %947 = vmatprep.subr.mxu0 0.0
        %948 = vmatpush1.msra.mxu0 0.0
        %949 = vmatprep.subr.mxu0 0.0
        %950 = vmatpush1.msra.mxu0 0.0
        %951 = vmatprep.subr.mxu0 0.0
        %952 = vmatpush1.msra.mxu0 0.0
        %953 = vmatprep.subr.mxu0 0.0
        %954 = vmatpush1.msra.mxu0 0.0
        %955 = vmatprep.subr.mxu0 0.0
        %956 = vmatpush1.msra.mxu0 0.0
        %957 = vmatprep.subr.mxu0 0.0
        %958 = vmatpush1.msra.mxu0 0.0
        %959 = vmatprep.subr.mxu0 0.0
        %960 = vmatpush1.msra.mxu0 0.0
        %961 = vmatprep.subr.mxu0 0.0
        %962 = vmatpush1.msra.mxu0 0.0
        %963 = vmatprep.subr.mxu0 0.0
        %964 = vmatpush1.msra.mxu0 0.0
        %965 = vmatprep.mubr.f32.mxu0 0.0
        %966 = vmatmul.mubr.f32.gmra.mrb[0].mxu0 %v858
        %v967 = vpop.f32.mrb[0].mxu0
        %v968 = vadd.f32 %v899, %v967
        %v969 = vpop.f32.mrb[0].mxu0
        %970 = vdwg.mxu0
        %971 = vst.msk [vmem:[%s455] sm:$0xff] %vm496, %v968
        %s972 = sand.u32 %s230, 1
        %s973 = scalar_lea.sflag [#allocation3], %s972
        %s974 = sand.u32 %s230, 1
        %s975 = smul.addr %s974, 8
        %s976 = scalar_lea.vmem [#allocation2], %s975
        %s977 = sand.u32 %s33, 1
        %s978 = scalar_lea.sflag [#allocation5], %s977
        %s979 = sand.u32 %s258, 1
        %s980 = smul.addr %s979, 8
        %s981 = scalar_lea.vmem [#allocation4], %s980
        %s982 = sand.u32 %s33, 1
        %s983 = scalar_lea.sflag [#allocation5], %s982
        %s984 = sand.u32 %s286, 1
        %s985 = smul.addr %s984, 8
        %s986 = scalar_lea.vmem [#allocation6], %s985
        %s987 = sand.u32 %s314, 1
        %s988 = scalar_lea.sflag [#allocation8], %s987
        %s989 = sand.u32 %s314, 1
        %s990 = scalar_lea.vmem [#allocation7], %s989
        %p991 = scmp.lt.s32.totalorder %s37, 1
        %s992 = scalar_select %p991, %s37, 1
        %p993 = scmp.lt.s32.totalorder %s38, 0
        %s994 = scalar_select %p993, %s38, 0
        %s995 = sadd.s32 %s994, %s992
        %s996 = scalar_lea.vmem %s12, %s995
        // Predicated region
        $region53: #{tpu_custom_call.1} parent=51 // pred_check
          %p997 = pneg %p240
        $region54: #{tpu_custom_call.1} parent=51 // pred_check_branch
          %999 = sbr.rel (%p997) target = $region56
        $region55: #{tpu_custom_call.1} parent=51 // pred_region
          %s1001 = ssub.s32 128, 128
          %1002 = vsyncadd %s973, %s1001
          %s1003 = sadd.s32 %s38, %s37
          %s1004 = smul.addr %s1003, 128
          %s1005 = scalar_lea.hbm %s8, %s1004
          %s1007 = sshll.u32 %s976, 4
          %s1008 = int_to_ptr.vmem [resolvable:$true] %s1007
          %1010 = dma.vmem_to_hbm [thread:$0]  %s1008, 128, %s1005, %s973
        $region56: #{tpu_custom_call.1} parent=51 // pred_fallthru
          _
        // Predicated region
        $region57: #{tpu_custom_call.1} parent=51 // pred_check
          %p1011 = pneg %p268
        $region58: #{tpu_custom_call.1} parent=51 // pred_check_branch
          %1013 = sbr.rel (%p1011) target = $region60
        $region59: #{tpu_custom_call.1} parent=51 // pred_region
          %s1015 = ssub.s32 128, 128
          %1016 = vsyncadd %s978, %s1015
          %s1017 = sadd.s32 %s38, %s37
          %s1018 = smul.addr %s1017, 128
          %s1019 = scalar_lea.hbm %s9, %s1018
          %s1021 = sshll.u32 %s981, 4
          %s1022 = int_to_ptr.vmem [resolvable:$true] %s1021
          %1024 = dma.vmem_to_hbm [thread:$0]  %s1022, 128, %s1019, %s978
        $region60: #{tpu_custom_call.1} parent=51 // pred_fallthru
          _
        // Predicated region
        $region61: #{tpu_custom_call.1} parent=51 // pred_check
          %p1025 = pneg %p296
        $region62: #{tpu_custom_call.1} parent=51 // pred_check_branch
          %1027 = sbr.rel (%p1025) target = $region64
        $region63: #{tpu_custom_call.1} parent=51 // pred_region
          %s1029 = ssub.s32 128, 128
          %1030 = vsyncadd %s983, %s1029
          %s1031 = sadd.s32 %s38, %s37
          %s1032 = smul.addr %s1031, 128
          %s1033 = scalar_lea.hbm %s10, %s1032
          %s1035 = sshll.u32 %s986, 4
          %s1036 = int_to_ptr.vmem [resolvable:$true] %s1035
          %1038 = dma.vmem_to_hbm [thread:$0]  %s1036, 128, %s1033, %s983
        $region64: #{tpu_custom_call.1} parent=51 // pred_fallthru
          _
        // Predicated region
        $region65: #{tpu_custom_call.1} parent=51 // pred_check
          %p1039 = pneg %p324
        $region66: #{tpu_custom_call.1} parent=51 // pred_check_branch
          %1041 = sbr.rel (%p1039) target = $region68
        $region67: #{tpu_custom_call.1} parent=51 // pred_region
          %s1043 = ssub.s32 16, 16
          %1044 = vsyncadd %s988, %s1043
          %s1045 = sadd.s32 %s38, %s37
          %s1046 = smul.addr %s1045, 16
          %s1047 = scalar_lea.hbm %s11, %s1046
          %s1049 = sshll.u32 %s990, 4
          %s1050 = int_to_ptr.vmem [resolvable:$true] %s1049
          %1052 = dma.vmem_to_hbm [thread:$0]  %s1050, 16, %s1047, %s988
        $region68: #{tpu_custom_call.1} parent=51 // pred_fallthru
          _
        // Predicated region
        $region69: #{tpu_custom_call.1} parent=51 // pred_check
          %p1053 = pneg %p352
        $region70: #{tpu_custom_call.1} parent=51 // pred_check_branch
          %1055 = sbr.rel (%p1053) target = $region72
        $region71: #{tpu_custom_call.1} parent=51 // pred_region
          _
        $region72: #{tpu_custom_call.1} parent=51 // pred_fallthru
          _
      $region52: #{tpu_custom_call.1} parent=5 // pred_fallthru
        _
      %p1056 = scmp.le.s32.totalorder 2, %s28
      // Predicated region
      $region73: #{tpu_custom_call.1} parent=5 // pred_check
        %p1057 = pneg %p1056
      $region74: #{tpu_custom_call.1} parent=5 // pred_check_branch
        %1059 = sbr.rel (%p1057) target = $region76
      $region75: #{tpu_custom_call.1} parent=5 // pred_region
        %s1060 = ssub.s32 %s28, 2
        // Predicated region
        $region77: #{tpu_custom_call.1} parent=75 // pred_check
          %p1061 = pneg %p246
        $region78: #{tpu_custom_call.1} parent=75 // pred_check_branch
          %1063 = sbr.rel (%p1061) target = $region80
        $region79: #{tpu_custom_call.1} parent=75 // pred_region
          %s1064 = sand.u32 %s231, 1
          %s1065 = scalar_lea.sflag [#allocation3], %s1064
          %s1066 = sand.u32 %s231, 1
          %s1067 = smul.addr %s1066, 8
          %s1068 = scalar_lea.vmem [#allocation2], %s1067
          %1069 = dma.done %s1065, 128
        $region80: #{tpu_custom_call.1} parent=75 // pred_fallthru
          _
        // Predicated region
        $region81: #{tpu_custom_call.1} parent=75 // pred_check
          %p1070 = pneg %p274
        $region82: #{tpu_custom_call.1} parent=75 // pred_check_branch
          %1072 = sbr.rel (%p1070) target = $region84
        $region83: #{tpu_custom_call.1} parent=75 // pred_region
          %s1073 = sand.u32 %s34, 1
          %s1074 = scalar_lea.sflag [#allocation5], %s1073
          %s1075 = sand.u32 %s259, 1
          %s1076 = smul.addr %s1075, 8
          %s1077 = scalar_lea.vmem [#allocation4], %s1076
          %1078 = dma.done %s1074, 128
        $region84: #{tpu_custom_call.1} parent=75 // pred_fallthru
          _
        // Predicated region
        $region85: #{tpu_custom_call.1} parent=75 // pred_check
          %p1079 = pneg %p302
        $region86: #{tpu_custom_call.1} parent=75 // pred_check_branch
          %1081 = sbr.rel (%p1079) target = $region88
        $region87: #{tpu_custom_call.1} parent=75 // pred_region
          %s1082 = sand.u32 %s34, 1
          %s1083 = scalar_lea.sflag [#allocation5], %s1082
          %s1084 = sand.u32 %s287, 1
          %s1085 = smul.addr %s1084, 8
          %s1086 = scalar_lea.vmem [#allocation6], %s1085
          %1087 = dma.done %s1083, 128
        $region88: #{tpu_custom_call.1} parent=75 // pred_fallthru
          _
        // Predicated region
        $region89: #{tpu_custom_call.1} parent=75 // pred_check
          %p1088 = pneg %p330
        $region90: #{tpu_custom_call.1} parent=75 // pred_check_branch
          %1090 = sbr.rel (%p1088) target = $region92
        $region91: #{tpu_custom_call.1} parent=75 // pred_region
          %s1091 = sand.u32 %s315, 1
          %s1092 = scalar_lea.sflag [#allocation8], %s1091
          %s1093 = sand.u32 %s315, 1
          %s1094 = scalar_lea.vmem [#allocation7], %s1093
          %1095 = dma.done %s1092, 16
        $region92: #{tpu_custom_call.1} parent=75 // pred_fallthru
          _
        // Predicated region
        $region93: #{tpu_custom_call.1} parent=75 // pred_check
          %p1096 = pneg %p358
        $region94: #{tpu_custom_call.1} parent=75 // pred_check_branch
          %1098 = sbr.rel (%p1096) target = $region96
        $region95: #{tpu_custom_call.1} parent=75 // pred_region
          %p1099 = scmp.lt.s32.totalorder %s39, 1
          %s1100 = scalar_select %p1099, %s39, 1
          %p1101 = scmp.lt.s32.totalorder %s40, 0
          %s1102 = scalar_select %p1101, %s40, 0
          %s1103 = sadd.s32 %s1102, %s1100
          %s1104 = scalar_lea.vmem %s12, %s1103
        $region96: #{tpu_custom_call.1} parent=75 // pred_fallthru
          _
      $region76: #{tpu_custom_call.1} parent=5 // pred_fallthru
        _
    $region6: #{tpu_custom_call.1} parent=1 // loop_footer
      %s32 = sadd.s32 1, %s28
    $region7: #{tpu_custom_call.1} parent=1 // loop_footer_branch
      %27 = sbr.rel target = $region3
    $region8: #{tpu_custom_call.1} parent=1 // loop_exit
      _
    %1105 = vsyncpa [#allocation3], 1
    %s1106 = scalar_lea.sflag [#allocation3], 1
    %1107 = vsyncpa %s1106, 1
    %1108 = vsyncpa [#allocation5], 1
    %s1109 = scalar_lea.sflag [#allocation5], 1
    %1110 = vsyncpa %s1109, 1
    %1111 = vsyncpa [#allocation8], 1
    %s1112 = scalar_lea.sflag [#allocation8], 1
    %1113 = vsyncpa %s1112, 1

// kernel: tpu_custom_call.1
$region0: #{tpu_custom_call.1}
  #allocation0 [shape = 'u32[]', space=smem, size = 0x4, offset = 0x4, fixed_abs, tag = 'smem constant byte address 0x4 - core index']
  #allocation1 [shape = 'u32[144,128]{1,0:T(1,128)}', space=vmem, size = 0x12000, scoped, tag = 'internal scratch']
  %s0 = inlined_call_operand.vmem [shape: f32[2,8,32], index: 0, kind: input, shape index: {}]
  %s1 = inlined_call_operand.vmem [shape: f32[32,128], index: 1, kind: input, shape index: {}]
  %s2 = inlined_call_operand.vmem [shape: f32[1,128], index: 2, kind: input, shape index: {}]
  %s3 = inlined_call_operand.vmem [shape: bf16[128,64], index: 3, kind: input, shape index: {}]
  %s4 = inlined_call_operand.vmem [shape: bf16[64,128], index: 4, kind: input, shape index: {}]
  %s5 = inlined_call_operand.vmem [shape: bf16[64,128], index: 5, kind: input, shape index: {}]
  %s6 = inlined_call_operand.vmem [shape: f32[128,32], index: 6, kind: input, shape index: {}]
  %s7 = inlined_call_operand.vmem [shape: f32[1,32], index: 7, kind: input, shape index: {}]
  %s8 = inlined_call_operand.hbm [shape: f32[2,8,16], index: 8, kind: output, shape index: {0}]
  %s9 = inlined_call_operand.hbm [shape: f32[2,8,16], index: 9, kind: output, shape index: {1}]
  %s10 = inlined_call_operand.hbm [shape: f32[2,8,32], index: 10, kind: output, shape index: {2}]
  %s11 = inlined_call_operand.hbm [shape: s32[2,1,8], index: 11, kind: output, shape index: {3}]
  %s12 = inlined_call_operand.vmem [shape: f32[2,1,1,1], index: 12, kind: output, shape index: {4}]
  %13 = xla_tuple %s8, %s9, %s10, %s11, %s12
  %s14 = sld [smem:[#allocation0]]
  $region97: #{tpu_custom_call.1} parent=0
    _
  %s16 = ssub.s32 1, %s14
  %s17 = scalar_select 0, %s16, %s14
  $region1: #{tpu_custom_call.1} parent=0
    #allocation2 [shape = 'u8[8192]{0}', space=vmem, size = 0x2000, scoped, tag = 'output window, operand 0']
    #allocation3 [shape = 's32[2]{0}', space=sflag, size = 0x8, scoped, tag = 'scoped memory for tpu_custom_call.1']
    #allocation4 [shape = 'u8[8192]{0}', space=vmem, size = 0x2000, scoped, tag = 'output window, operand 1']
    #allocation5 [shape = 's32[2]{0}', space=sflag, size = 0x8, scoped, tag = 'scoped memory for tpu_custom_call.1']
    #allocation6 [shape = 'u8[8192]{0}', space=vmem, size = 0x2000, scoped, tag = 'output window, operand 2']
    #allocation7 [shape = 'u8[1024]{0}', space=vmem, size = 0x400, scoped, tag = 'output window, operand 3']
    #allocation8 [shape = 's32[2]{0}', space=sflag, size = 0x8, scoped, tag = 'scoped memory for tpu_custom_call.1']
    %18 = vsyncpa [#allocation3], 0
    %s19 = scalar_lea.sflag [#allocation3], 1
    %20 = vsyncpa %s19, 0
    %21 = vsyncpa [#allocation5], 0
    %s22 = scalar_lea.sflag [#allocation5], 1
    %23 = vsyncpa %s22, 0
    %24 = vsyncpa [#allocation8], 0
    %s25 = scalar_lea.sflag [#allocation8], 1
    %26 = vsyncpa %s25, 0
    loop: start=0, step=1, limit=4
    $region2: #{tpu_custom_call.1} parent=1 // loop_pre_header
      _
    $region3: #{tpu_custom_call.1} parent=1 // loop_header
      %s28 = sphi 0, %s32
      %p29 = scmp.ge.s32.totalorder %s28, 4
      %s35 = sphi 0, %s47
      %s36 = sphi 0, %s43
      %s37 = sphi 0, %s35
      %s38 = sphi 0, %s36
      %s39 = sphi 0, %s37
      %s40 = sphi 0, %s38
      %s52 = sphi 0, %s54
      %s55 = sphi 0, %s52
      %s56 = sphi 0, %s55
      %s72 = sphi 0, %s56
      %s76 = sphi 0, %s76
      %s78 = sphi 0, %s76
      %s79 = sphi 0, %s78
      %s93 = sphi 0, %s79
      %s97 = sphi 0, %s97
      %s99 = sphi 0, %s97
      %s100 = sphi 0, %s99
      %s114 = sphi 0, %s100
      %s118 = sphi 0, %s118
      %s120 = sphi 0, %s118
      %s121 = sphi 0, %s120
      %s135 = sphi 0, %s121
      %s139 = sphi 0, %s139
      %s141 = sphi 0, %s139
      %s142 = sphi 0, %s141
      %s156 = sphi 0, %s142
      %s160 = sphi 0, %s160
      %s162 = sphi 0, %s160
      %s163 = sphi 0, %s162
      %s177 = sphi 0, %s163
      %s181 = sphi 0, %s181
      %s183 = sphi 0, %s181
      %s184 = sphi 0, %s183
      %s198 = sphi 0, %s184
      %s202 = sphi 0, %s202
      %s204 = sphi 0, %s202
      %s205 = sphi 0, %s204
      %s219 = sphi 0, %s205
      %s227 = sphi 0, %s229
      %s230 = sphi 0, %s227
      %s231 = sphi 0, %s230
      %s247 = sphi 0, %s231
      %s255 = sphi 0, %s257
      %s258 = sphi 0, %s255
      %s259 = sphi 0, %s258
      %s275 = sphi 0, %s259
      %s283 = sphi 0, %s285
      %s286 = sphi 0, %s283
      %s287 = sphi 0, %s286
      %s303 = sphi 0, %s287
      %s311 = sphi 0, %s313
      %s314 = sphi 0, %s311
      %s315 = sphi 0, %s314
      %s331 = sphi 0, %s315
      %s339 = sphi 0, %s341
      %s342 = sphi 0, %s339
      %s343 = sphi 0, %s342
      %s359 = sphi 0, %s343
    $region4: #{tpu_custom_call.1} parent=1 // loop_header_branch
      %31 = sbr.rel (%p29) target = $region8
    $region5: #{tpu_custom_call.1} parent=1 // loop_body
      %s33 = ssub.s32 %s28, 1
      %s34 = ssub.s32 %s28, 2
      %s41 = sadd.s32 1, %s36
      %p42 = scmp.ge.s32.totalorder %s41, 1
      %s43 = scalar_select %p42, 0, %s41
      %s44 = sadd.s32 1, %s35
      %s45 = scalar_select %p42, %s44, %s35
      %p46 = scmp.ge.s32.totalorder %s45, 2
      %s47 = scalar_select %p46, 0, %s45
      %s48 = ssub.s32 %s35, %s47
      %s49 = ssub.s32 %s36, %s43
      %s50 = sor.u32 %s48, %s49
      %p51 = scmp.eq.s32.totalorder %s50, 0
      %s53 = sadd.s32 %s52, 1
      %s54 = scalar_select %p51, %s52, %s53
      %p57 = pneg %p51
      %p58 = scmp.eq.s32.totalorder %s28, 1
      %p59 = por %p57, %p58
      %p60 = scmp.ne.s32.totalorder %s52, %s55
      %p61 = scmp.eq.s32.totalorder %s28, 0
      %p62 = por %p60, %p61
      %p63 = scmp.ne.s32.totalorder %s52, %s55
      %p64 = scmp.eq.s32.totalorder %s33, 1
      %p65 = por %p63, %p64
      %p66 = scmp.ne.s32.totalorder %s55, %s56
      %p67 = scmp.eq.s32.totalorder %s33, 0
      %p68 = por %p66, %p67
      %p69 = scmp.ne.s32.totalorder %s55, %s56
      %p70 = scmp.eq.s32.totalorder %s34, 1
      %p71 = por %p69, %p70
      %p73 = scmp.ne.s32.totalorder %s56, %s72
      %p74 = scmp.eq.s32.totalorder %s34, 0
      %p75 = por %p73, %p74
      %s77 = sadd.s32 %s76, 1
      %p80 = scmp.eq.s32.totalorder %s28, 1
      %p81 = scmp.ne.s32.totalorder %s76, %s78
      %p82 = scmp.eq.s32.totalorder %s28, 0
      %p83 = por %p81, %p82
      %p84 = scmp.ne.s32.totalorder %s76, %s78
      %p85 = scmp.eq.s32.totalorder %s33, 1
      %p86 = por %p84, %p85
      %p87 = scmp.ne.s32.totalorder %s78, %s79
      %p88 = scmp.eq.s32.totalorder %s33, 0
      %p89 = por %p87, %p88
      %p90 = scmp.ne.s32.totalorder %s78, %s79
      %p91 = scmp.eq.s32.totalorder %s34, 1
      %p92 = por %p90, %p91
      %p94 = scmp.ne.s32.totalorder %s79, %s93
      %p95 = scmp.eq.s32.totalorder %s34, 0
      %p96 = por %p94, %p95
      %s98 = sadd.s32 %s97, 1
      %p101 = scmp.eq.s32.totalorder %s28, 1
      %p102 = scmp.ne.s32.totalorder %s97, %s99
      %p103 = scmp.eq.s32.totalorder %s28, 0
      %p104 = por %p102, %p103
      %p105 = scmp.ne.s32.totalorder %s97, %s99
      %p106 = scmp.eq.s32.totalorder %s33, 1
      %p107 = por %p105, %p106
      %p108 = scmp.ne.s32.totalorder %s99, %s100
      %p109 = scmp.eq.s32.totalorder %s33, 0
      %p110 = por %p108, %p109
      %p111 = scmp.ne.s32.totalorder %s99, %s100
      %p112 = scmp.eq.s32.totalorder %s34, 1
      %p113 = por %p111, %p112
      %p115 = scmp.ne.s32.totalorder %s100, %s114
      %p116 = scmp.eq.s32.totalorder %s34, 0
      %p117 = por %p115, %p116
      %s119 = sadd.s32 %s118, 1
      %p122 = scmp.eq.s32.totalorder %s28, 1
      %p123 = scmp.ne.s32.totalorder %s118, %s120
      %p124 = scmp.eq.s32.totalorder %s28, 0
      %p125 = por %p123, %p124
      %p126 = scmp.ne.s32.totalorder %s118, %s120
      %p127 = scmp.eq.s32.totalorder %s33, 1
      %p128 = por %p126, %p127
      %p129 = scmp.ne.s32.totalorder %s120, %s121
      %p130 = scmp.eq.s32.totalorder %s33, 0
      %p131 = por %p129, %p130
      %p132 = scmp.ne.s32.totalorder %s120, %s121
      %p133 = scmp.eq.s32.totalorder %s34, 1
      %p134 = por %p132, %p133
      %p136 = scmp.ne.s32.totalorder %s121, %s135
      %p137 = scmp.eq.s32.totalorder %s34, 0
      %p138 = por %p136, %p137
      %s140 = sadd.s32 %s139, 1
      %p143 = scmp.eq.s32.totalorder %s28, 1
      %p144 = scmp.ne.s32.totalorder %s139, %s141
      %p145 = scmp.eq.s32.totalorder %s28, 0
      %p146 = por %p144, %p145
      %p147 = scmp.ne.s32.totalorder %s139, %s141
      %p148 = scmp.eq.s32.totalorder %s33, 1
      %p149 = por %p147, %p148
      %p150 = scmp.ne.s32.totalorder %s141, %s142
      %p151 = scmp.eq.s32.totalorder %s33, 0
      %p152 = por %p150, %p151
      %p153 = scmp.ne.s32.totalorder %s141, %s142
      %p154 = scmp.eq.s32.totalorder %s34, 1
      %p155 = por %p153, %p154
      %p157 = scmp.ne.s32.totalorder %s142, %s156
      %p158 = scmp.eq.s32.totalorder %s34, 0
      %p159 = por %p157, %p158
      %s161 = sadd.s32 %s160, 1
      %p164 = scmp.eq.s32.totalorder %s28, 1
      %p165 = scmp.ne.s32.totalorder %s160, %s162
      %p166 = scmp.eq.s32.totalorder %s28, 0
      %p167 = por %p165, %p166
      %p168 = scmp.ne.s32.totalorder %s160, %s162
      %p169 = scmp.eq.s32.totalorder %s33, 1
      %p170 = por %p168, %p169
      %p171 = scmp.ne.s32.totalorder %s162, %s163
      %p172 = scmp.eq.s32.totalorder %s33, 0
      %p173 = por %p171, %p172
      %p174 = scmp.ne.s32.totalorder %s162, %s163
      %p175 = scmp.eq.s32.totalorder %s34, 1
      %p176 = por %p174, %p175
      %p178 = scmp.ne.s32.totalorder %s163, %s177
      %p179 = scmp.eq.s32.totalorder %s34, 0
      %p180 = por %p178, %p179
      %s182 = sadd.s32 %s181, 1
      %p185 = scmp.eq.s32.totalorder %s28, 1
      %p186 = scmp.ne.s32.totalorder %s181, %s183
      %p187 = scmp.eq.s32.totalorder %s28, 0
      %p188 = por %p186, %p187
      %p189 = scmp.ne.s32.totalorder %s181, %s183
      %p190 = scmp.eq.s32.totalorder %s33, 1
      %p191 = por %p189, %p190
      %p192 = scmp.ne.s32.totalorder %s183, %s184
      %p193 = scmp.eq.s32.totalorder %s33, 0
      %p194 = por %p192, %p193
      %p195 = scmp.ne.s32.totalorder %s183, %s184
      %p196 = scmp.eq.s32.totalorder %s34, 1
      %p197 = por %p195, %p196
      %p199 = scmp.ne.s32.totalorder %s184, %s198
      %p200 = scmp.eq.s32.totalorder %s34, 0
      %p201 = por %p199, %p200
      %s203 = sadd.s32 %s202, 1
      %p206 = scmp.eq.s32.totalorder %s28, 1
      %p207 = scmp.ne.s32.totalorder %s202, %s204
      %p208 = scmp.eq.s32.totalorder %s28, 0
      %p209 = por %p207, %p208
      %p210 = scmp.ne.s32.totalorder %s202, %s204
      %p211 = scmp.eq.s32.totalorder %s33, 1
      %p212 = por %p210, %p211
      %p213 = scmp.ne.s32.totalorder %s204, %s205
      %p214 = scmp.eq.s32.totalorder %s33, 0
      %p215 = por %p213, %p214
      %p216 = scmp.ne.s32.totalorder %s204, %s205
      %p217 = scmp.eq.s32.totalorder %s34, 1
      %p218 = por %p216, %p217
      %p220 = scmp.ne.s32.totalorder %s205, %s219
      %p221 = scmp.eq.s32.totalorder %s34, 0
      %p222 = por %p220, %p221
      %s223 = ssub.s32 %s35, %s47
      %s224 = ssub.s32 %s36, %s43
      %s225 = sor.u32 %s223, %s224
      %p226 = scmp.eq.s32.totalorder %s225, 0
      %s228 = sadd.s32 %s227, 1
      %s229 = scalar_select %p226, %s227, %s228
      %p232 = pneg %p226
      %p233 = scmp.eq.s32.totalorder %s28, 1
      %p234 = por %p232, %p233
      %p235 = scmp.ne.s32.totalorder %s227, %s230
      %p236 = scmp.eq.s32.totalorder %s28, 0
      %p237 = por %p235, %p236
      %p238 = scmp.ne.s32.totalorder %s227, %s230
      %p239 = scmp.eq.s32.totalorder %s33, 1
      %p240 = por %p238, %p239
      %p241 = scmp.ne.s32.totalorder %s230, %s231
      %p242 = scmp.eq.s32.totalorder %s33, 0
      %p243 = por %p241, %p242
      %p244 = scmp.ne.s32.totalorder %s230, %s231
      %p245 = scmp.eq.s32.totalorder %s34, 1
      %p246 = por %p244, %p245
      %p248 = scmp.ne.s32.totalorder %s231, %s247
      %p249 = scmp.eq.s32.totalorder %s34, 0
      %p250 = por %p248, %p249
      %s251 = ssub.s32 %s35, %s47
      %s252 = ssub.s32 %s36, %s43
      %s253 = sor.u32 %s251, %s252
      %p254 = scmp.eq.s32.totalorder %s253, 0
      %s256 = sadd.s32 %s255, 1
      %s257 = scalar_select %p254, %s255, %s256
      %p260 = pneg %p254
      %p261 = scmp.eq.s32.totalorder %s28, 1
      %p262 = por %p260, %p261
      %p263 = scmp.ne.s32.totalorder %s255, %s258
      %p264 = scmp.eq.s32.totalorder %s28, 0
      %p265 = por %p263, %p264
      %p266 = scmp.ne.s32.totalorder %s255, %s258
      %p267 = scmp.eq.s32.totalorder %s33, 1
      %p268 = por %p266, %p267
      %p269 = scmp.ne.s32.totalorder %s258, %s259
      %p270 = scmp.eq.s32.totalorder %s33, 0
      %p271 = por %p269, %p270
      %p272 = scmp.ne.s32.totalorder %s258, %s259
      %p273 = scmp.eq.s32.totalorder %s34, 1
      %p274 = por %p272, %p273
      %p276 = scmp.ne.s32.totalorder %s259, %s275
      %p277 = scmp.eq.s32.totalorder %s34, 0
      %p278 = por %p276, %p277
      %s279 = ssub.s32 %s35, %s47
      %s280 = ssub.s32 %s36, %s43
      %s281 = sor.u32 %s279, %s280
      %p282 = scmp.eq.s32.totalorder %s281, 0
      %s284 = sadd.s32 %s283, 1
      %s285 = scalar_select %p282, %s283, %s284
      %p288 = pneg %p282
      %p289 = scmp.eq.s32.totalorder %s28, 1
      %p290 = por %p288, %p289
      %p291 = scmp.ne.s32.totalorder %s283, %s286
      %p292 = scmp.eq.s32.totalorder %s28, 0
      %p293 = por %p291, %p292
      %p294 = scmp.ne.s32.totalorder %s283, %s286
      %p295 = scmp.eq.s32.totalorder %s33, 1
      %p296 = por %p294, %p295
      %p297 = scmp.ne.s32.totalorder %s286, %s287
      %p298 = scmp.eq.s32.totalorder %s33, 0
      %p299 = por %p297, %p298
      %p300 = scmp.ne.s32.totalorder %s286, %s287
      %p301 = scmp.eq.s32.totalorder %s34, 1
      %p302 = por %p300, %p301
      %p304 = scmp.ne.s32.totalorder %s287, %s303
      %p305 = scmp.eq.s32.totalorder %s34, 0
      %p306 = por %p304, %p305
      %s307 = ssub.s32 %s35, %s47
      %s308 = ssub.s32 %s36, %s43
      %s309 = sor.u32 %s307, %s308
      %p310 = scmp.eq.s32.totalorder %s309, 0
      %s312 = sadd.s32 %s311, 1
      %s313 = scalar_select %p310, %s311, %s312
      %p316 = pneg %p310
      %p317 = scmp.eq.s32.totalorder %s28, 1
      %p318 = por %p316, %p317
      %p319 = scmp.ne.s32.totalorder %s311, %s314
      %p320 = scmp.eq.s32.totalorder %s28, 0
      %p321 = por %p319, %p320
      %p322 = scmp.ne.s32.totalorder %s311, %s314
      %p323 = scmp.eq.s32.totalorder %s33, 1
      %p324 = por %p322, %p323
      %p325 = scmp.ne.s32.totalorder %s314, %s315
      %p326 = scmp.eq.s32.totalorder %s33, 0
      %p327 = por %p325, %p326
      %p328 = scmp.ne.s32.totalorder %s314, %s315
      %p329 = scmp.eq.s32.totalorder %s34, 1
      %p330 = por %p328, %p329
      %p332 = scmp.ne.s32.totalorder %s315, %s331
      %p333 = scmp.eq.s32.totalorder %s34, 0
      %p334 = por %p332, %p333
      %s335 = ssub.s32 %s35, %s47
      %s336 = ssub.s32 %s36, %s43
      %s337 = sor.u32 %s335, %s336
      %p338 = scmp.eq.s32.totalorder %s337, 0
      %s340 = sadd.s32 %s339, 1
      %s341 = scalar_select %p338, %s339, %s340
      %p344 = pneg %p338
      %p345 = scmp.eq.s32.totalorder %s28, 1
      %p346 = por %p344, %p345
      %p347 = scmp.ne.s32.totalorder %s339, %s342
      %p348 = scmp.eq.s32.totalorder %s28, 0
      %p349 = por %p347, %p348
      %p350 = scmp.ne.s32.totalorder %s339, %s342
      %p351 = scmp.eq.s32.totalorder %s33, 1
      %p352 = por %p350, %p351
      %p353 = scmp.ne.s32.totalorder %s342, %s343
      %p354 = scmp.eq.s32.totalorder %s33, 0
      %p355 = por %p353, %p354
      %p356 = scmp.ne.s32.totalorder %s342, %s343
      %p357 = scmp.eq.s32.totalorder %s34, 1
      %p358 = por %p356, %p357
      %p360 = scmp.ne.s32.totalorder %s343, %s359
      %p361 = scmp.eq.s32.totalorder %s34, 0
      %p362 = por %p360, %p361
      %p363 = scmp.le.s32.totalorder 1, %s28
      %p364 = scmp.lt.s32.totalorder %s28, 3
      %p365 = pnand %p363, %p364
      %p366 = pneg %p365
      // Predicated region
      $region9: #{tpu_custom_call.1} parent=5 // pred_check
        _
      $region10: #{tpu_custom_call.1} parent=5 // pred_check_branch
        %368 = sbr.rel (%p365) target = $region12
      $region11: #{tpu_custom_call.1} parent=5 // pred_region
        %s369 = ssub.s32 %s28, 1
        // Predicated region
        $region13: #{tpu_custom_call.1} parent=11 // pred_check
          %p370 = pneg %p89
        $region14: #{tpu_custom_call.1} parent=11 // pred_check_branch
          %372 = sbr.rel (%p370) target = $region16
        $region15: #{tpu_custom_call.1} parent=11 // pred_region
          _
        $region16: #{tpu_custom_call.1} parent=11 // pred_fallthru
          _
        // Predicated region
        $region17: #{tpu_custom_call.1} parent=11 // pred_check
          %p373 = pneg %p110
        $region18: #{tpu_custom_call.1} parent=11 // pred_check_branch
          %375 = sbr.rel (%p373) target = $region20
        $region19: #{tpu_custom_call.1} parent=11 // pred_region
          _
        $region20: #{tpu_custom_call.1} parent=11 // pred_fallthru
          _
        // Predicated region
        $region21: #{tpu_custom_call.1} parent=11 // pred_check
          %p376 = pneg %p131
        $region22: #{tpu_custom_call.1} parent=11 // pred_check_branch
          %378 = sbr.rel (%p376) target = $region24
        $region23: #{tpu_custom_call.1} parent=11 // pred_region
          _
        $region24: #{tpu_custom_call.1} parent=11 // pred_fallthru
          _
        // Predicated region
        $region25: #{tpu_custom_call.1} parent=11 // pred_check
          %p379 = pneg %p152
        $region26: #{tpu_custom_call.1} parent=11 // pred_check_branch
          %381 = sbr.rel (%p379) target = $region28
        $region27: #{tpu_custom_call.1} parent=11 // pred_region
          _
        $region28: #{tpu_custom_call.1} parent=11 // pred_fallthru
          _
        // Predicated region
        $region29: #{tpu_custom_call.1} parent=11 // pred_check
          %p382 = pneg %p173
        $region30: #{tpu_custom_call.1} parent=11 // pred_check_branch
          %384 = sbr.rel (%p382) target = $region32
        $region31: #{tpu_custom_call.1} parent=11 // pred_region
          _
        $region32: #{tpu_custom_call.1} parent=11 // pred_fallthru
          _
        // Predicated region
        $region33: #{tpu_custom_call.1} parent=11 // pred_check
          %p385 = pneg %p194
        $region34: #{tpu_custom_call.1} parent=11 // pred_check_branch
          %387 = sbr.rel (%p385) target = $region36
        $region35: #{tpu_custom_call.1} parent=11 // pred_region
          _
        $region36: #{tpu_custom_call.1} parent=11 // pred_fallthru
          _
        // Predicated region
        $region37: #{tpu_custom_call.1} parent=11 // pred_check
          %p388 = pneg %p215
        $region38: #{tpu_custom_call.1} parent=11 // pred_check_branch
          %390 = sbr.rel (%p388) target = $region40
        $region39: #{tpu_custom_call.1} parent=11 // pred_region
          _
        $region40: #{tpu_custom_call.1} parent=11 // pred_fallthru
          _
      $region12: #{tpu_custom_call.1} parent=5 // pred_fallthru
        _
      %p391 = scmp.lt.s32.totalorder %s28, 2
      // Predicated region
      $region41: #{tpu_custom_call.1} parent=5 // pred_check
        %p392 = pneg %p391
      $region42: #{tpu_custom_call.1} parent=5 // pred_check_branch
        %394 = sbr.rel (%p392) target = $region44
      $region43: #{tpu_custom_call.1} parent=5 // pred_region
        // Predicated region
        $region45: #{tpu_custom_call.1} parent=43 // pred_check
          %p395 = pneg %p62
        $region46: #{tpu_custom_call.1} parent=43 // pred_check_branch
          %397 = sbr.rel (%p395) target = $region48
        $region47: #{tpu_custom_call.1} parent=43 // pred_region
          %p398 = scmp.lt.s32.totalorder %s35, 1
          %s399 = scalar_select %p398, %s35, 1
          %p400 = scmp.lt.s32.totalorder %s36, 0
          %s401 = scalar_select %p400, %s36, 0
          %s402 = sadd.s32 %s401, %s399
          %s403 = smul.addr %s402, 8
          %s404 = scalar_lea.vmem %s0, %s403
        $region48: #{tpu_custom_call.1} parent=43 // pred_fallthru
          _
      $region44: #{tpu_custom_call.1} parent=5 // pred_fallthru
        _
      %p405 = scmp.le.s32.totalorder 1, %s28
      %p406 = scmp.lt.s32.totalorder %s28, 3
      %p407 = pnand %p405, %p406
      %p408 = pneg %p407
      // Predicated region
      $region49: #{tpu_custom_call.1} parent=5 // pred_check
        _
      $region50: #{tpu_custom_call.1} parent=5 // pred_check_branch
        %410 = sbr.rel (%p407) target = $region52
      $region51: #{tpu_custom_call.1} parent=5 // pred_region
        %s411 = ssub.s32 %s28, 1
        %p412 = scmp.lt.s32.totalorder %s37, 1
        %s413 = scalar_select %p412, %s37, 1
        %p414 = scmp.lt.s32.totalorder %s38, 0
        %s415 = scalar_select %p414, %s38, 0
        %s416 = sadd.s32 %s415, %s413
        %s417 = smul.addr %s416, 8
        %s418 = scalar_lea.vmem %s0, %s417
        %p419 = pneg %p68
        %p420 = pneg %p65
        %p421 = pneg %p89
        %p422 = pneg %p86
        %p423 = pneg %p110
        %p424 = pneg %p107
        %p425 = pneg %p131
        %p426 = pneg %p128
        %p427 = pneg %p152
        %p428 = pneg %p149
        %p429 = pneg %p173
        %p430 = pneg %p170
        %p431 = pneg %p194
        %p432 = pneg %p191
        %p433 = pneg %p215
        %p434 = pneg %p212
        %p435 = pneg %p243
        %p436 = pneg %p240
        %s437 = sand.u32 %s230, 1
        %s438 = scalar_lea.sflag [#allocation3], %s437
        %s439 = sand.u32 %s230, 1
        %s440 = smul.addr %s439, 8
        %s441 = scalar_lea.vmem [#allocation2], %s440
        %p442 = pneg %p271
        %p443 = pneg %p268
        %s444 = sand.u32 %s33, 1
        %s445 = scalar_lea.sflag [#allocation5], %s444
        %s446 = sand.u32 %s258, 1
        %s447 = smul.addr %s446, 8
        %s448 = scalar_lea.vmem [#allocation4], %s447
        %p449 = pneg %p299
        %p450 = pneg %p296
        %s451 = sand.u32 %s33, 1
        %s452 = scalar_lea.sflag [#allocation5], %s451
        %s453 = sand.u32 %s286, 1
        %s454 = smul.addr %s453, 8
        %s455 = scalar_lea.vmem [#allocation6], %s454
        %p456 = pneg %p327
        %p457 = pneg %p324
        %s458 = sand.u32 %s314, 1
        %s459 = scalar_lea.sflag [#allocation8], %s458
        %s460 = sand.u32 %s314, 1
        %s461 = scalar_lea.vmem [#allocation7], %s460
        %p462 = pneg %p355
        %p463 = pneg %p352
        %p464 = scmp.lt.s32.totalorder %s37, 1
        %s465 = scalar_select %p464, %s37, 1
        %p466 = scmp.lt.s32.totalorder %s38, 0
        %s467 = scalar_select %p466, %s38, 0
        %s468 = sadd.s32 %s467, %s465
        %s469 = scalar_lea.vmem %s12, %s468
        %p470 = scmp.lt.s32.totalorder %s37, 1
        %s471 = scalar_select %p470, %s37, 1
        %p472 = scmp.lt.s32.totalorder %s38, 0
        %s473 = scalar_select %p472, %s38, 0
        %s474 = sadd.s32 %s473, %s471
        %s475 = smul.addr %s474, 8
        %s476 = scalar_lea.vmem %s0, %s475
        %p477 = scmp.lt.s32.totalorder %s37, 1
        %s478 = scalar_select %p477, %s37, 1
        %p479 = scmp.lt.s32.totalorder %s38, 0
        %s480 = scalar_select %p479, %s38, 0
        %s481 = sadd.s32 %s480, %s478
        %s482 = scalar_lea.vmem %s12, %s481
        %v484 = vld [vmem:[%s476] sm:$0xff]
        %v485 = vld [vmem:[%s1] sm:$0xff]
        %v486 = vld [vmem:[%s1 + $0x8] sm:$0xff]
        %v487 = vld [vmem:[%s1 + $0x10] sm:$0xff]
        %v488 = vld [vmem:[%s1 + $0x18] sm:$0xff]
        %v489 = vld [vmem:[%s2] sm:$0x1]
        %v491 = vlaneseq
        %v492 = vshrl.u32 %v491, 7
        %v493 = vsub.s32 0, %v492
        %v494 = vrot.slane %v489, %v493
        %vm496 = vcmask 261120
        %v498 = vsel %vm496, %v484, 0
        %500 = vmatprep.subr.mxu0 0.0
        %501 = vmatpush1.msra.mxu0 %v485
        %502 = vmatprep.subr.mxu0 0.0
        %503 = vmatpush1.msra.mxu0 %v486
        %504 = vmatprep.subr.mxu0 0.0
        %505 = vmatpush1.msra.mxu0 %v487
        %506 = vmatprep.subr.mxu0 0.0
        %507 = vmatpush1.msra.mxu0 %v488
        %508 = vmatprep.subr.mxu0 0.0
        %509 = vmatpush1.msra.mxu0 0.0
        %510 = vmatprep.subr.mxu0 0.0
        %511 = vmatpush1.msra.mxu0 0.0
        %512 = vmatprep.subr.mxu0 0.0
        %513 = vmatpush1.msra.mxu0 0.0
        %514 = vmatprep.subr.mxu0 0.0
        %515 = vmatpush1.msra.mxu0 0.0
        %516 = vmatprep.subr.mxu0 0.0
        %517 = vmatpush1.msra.mxu0 0.0
        %518 = vmatprep.subr.mxu0 0.0
        %519 = vmatpush1.msra.mxu0 0.0
        %520 = vmatprep.subr.mxu0 0.0
        %521 = vmatpush1.msra.mxu0 0.0
        %522 = vmatprep.subr.mxu0 0.0
        %523 = vmatpush1.msra.mxu0 0.0
        %524 = vmatprep.subr.mxu0 0.0
        %525 = vmatpush1.msra.mxu0 0.0
        %526 = vmatprep.subr.mxu0 0.0
        %527 = vmatpush1.msra.mxu0 0.0
        %528 = vmatprep.subr.mxu0 0.0
        %529 = vmatpush1.msra.mxu0 0.0
        %530 = vmatprep.subr.mxu0 0.0
        %531 = vmatpush1.msra.mxu0 0.0
        %532 = vmatprep.subr.mxu0 0.0
        %533 = vmatpush1.msra.mxu0 0.0
        %534 = vmatprep.subr.mxu0 0.0
        %535 = vmatpush1.msra.mxu0 0.0
        %536 = vmatprep.subr.mxu0 0.0
        %537 = vmatpush1.msra.mxu0 0.0
        %538 = vmatprep.subr.mxu0 0.0
        %539 = vmatpush1.msra.mxu0 0.0
        %540 = vmatprep.subr.mxu0 0.0
        %541 = vmatpush1.msra.mxu0 0.0
        %542 = vmatprep.subr.mxu0 0.0
        %543 = vmatpush1.msra.mxu0 0.0
        %544 = vmatprep.subr.mxu0 0.0
        %545 = vmatpush1.msra.mxu0 0.0
        %546 = vmatprep.subr.mxu0 0.0
        %547 = vmatpush1.msra.mxu0 0.0
        %548 = vmatprep.subr.mxu0 0.0
        %549 = vmatpush1.msra.mxu0 0.0
        %550 = vmatprep.subr.mxu0 0.0
        %551 = vmatpush1.msra.mxu0 0.0
        %552 = vmatprep.subr.mxu0 0.0
        %553 = vmatpush1.msra.mxu0 0.0
        %554 = vmatprep.subr.mxu0 0.0
        %555 = vmatpush1.msra.mxu0 0.0
        %556 = vmatprep.subr.mxu0 0.0
        %557 = vmatpush1.msra.mxu0 0.0
        %558 = vmatprep.subr.mxu0 0.0
        %559 = vmatpush1.msra.mxu0 0.0
        %560 = vmatprep.subr.mxu0 0.0
        %561 = vmatpush1.msra.mxu0 0.0
        %562 = vmatprep.subr.mxu0 0.0
        %563 = vmatpush1.msra.mxu0 0.0
        %564 = vmatprep.mubr.f32.mxu0 0.0
        %565 = vmatmul.mubr.f32.gmra.mrb[0].mxu0 %v498
        %v566 = vpop.f32.mrb[0].mxu0
        %v567 = vadd.f32 %v494, %v566
        %v568 = vpop.f32.mrb[0].mxu0
        %569 = vdwg.mxu0
        %vm570 = vcmask 130048
        %571 = vst.msk [vmem:[%s441] sm:$0xff] %vm570, %v567
        %v572 = vmul.f32 %v567, %v567
        %573 = vadd.xlane.f32.xlu0 %v572
        %v574 = vpop.xlane.xlu0 %573
        %v575 = vmax.f32 %v574, 1e-24
        %v576 = vrsqrt.pop %v575
        %v577 = vmul.f32 %v567, %v576
        %v578 = vpack.c.bf16 %v577, %v577
        %v579 = vld [vmem:[%s3] sm:$0xf]
        %v580 = vld [vmem:[%s3 + $0x4] sm:$0xf]
        %v581 = vld [vmem:[%s3 + $0x8] sm:$0xf]
        %v582 = vld [vmem:[%s3 + $0xc] sm:$0xf]
        %v583 = vld [vmem:[%s3 + $0x10] sm:$0xf]
        %v584 = vld [vmem:[%s3 + $0x14] sm:$0xf]
        %v585 = vld [vmem:[%s3 + $0x18] sm:$0xf]
        %v586 = vld [vmem:[%s3 + $0x1c] sm:$0xf]
        %v587 = vld [vmem:[%s3 + $0x20] sm:$0xf]
        %v588 = vld [vmem:[%s3 + $0x24] sm:$0xf]
        %v589 = vld [vmem:[%s3 + $0x28] sm:$0xf]
        %v590 = vld [vmem:[%s3 + $0x2c] sm:$0xf]
        %v591 = vld [vmem:[%s3 + $0x30] sm:$0xf]
        %v592 = vld [vmem:[%s3 + $0x34] sm:$0xf]
        %v593 = vld [vmem:[%s3 + $0x38] sm:$0xf]
        %v594 = vld [vmem:[%s3 + $0x3c] sm:$0xf]
        %v611 = vunpack.c.l.b16 %v579
        %v612 = vunpack.c.l.b16 %v580
        %v613 = vunpack.c.l.b16 %v581
        %v614 = vunpack.c.l.b16 %v582
        %v615 = vunpack.c.l.b16 %v583
        %v616 = vunpack.c.l.b16 %v584
        %v617 = vunpack.c.l.b16 %v585
        %v618 = vunpack.c.l.b16 %v586
        %v619 = vunpack.c.l.b16 %v587
        %v620 = vunpack.c.l.b16 %v588
        %v621 = vunpack.c.l.b16 %v589
        %v622 = vunpack.c.l.b16 %v590
        %v623 = vunpack.c.l.b16 %v591
        %v624 = vunpack.c.l.b16 %v592
        %v625 = vunpack.c.l.b16 %v593
        %v626 = vunpack.c.l.b16 %v594
        %v627 = vpack.c.b16 %v612, %v611
        %v628 = vpack.c.b16 %v614, %v613
        %v629 = vpack.c.b16 %v616, %v615
        %v630 = vpack.c.b16 %v618, %v617
        %v631 = vpack.c.b16 %v620, %v619
        %v632 = vpack.c.b16 %v622, %v621
        %v633 = vpack.c.b16 %v624, %v623
        %v634 = vpack.c.b16 %v626, %v625
        %643 = vmatprep.subr.bf16.mxu0 0
        %644 = vmatpush1.bf16.msra.mxu0 %v627
        %645 = vmatprep.subr.bf16.mxu0 0
        %646 = vmatpush1.bf16.msra.mxu0 %v628
        %647 = vmatprep.subr.bf16.mxu0 0
        %648 = vmatpush1.bf16.msra.mxu0 %v629
        %649 = vmatprep.subr.bf16.mxu0 0
        %650 = vmatpush1.bf16.msra.mxu0 %v630
        %651 = vmatprep.subr.bf16.mxu0 0
        %652 = vmatpush1.bf16.msra.mxu0 %v631
        %653 = vmatprep.subr.bf16.mxu0 0
        %654 = vmatpush1.bf16.msra.mxu0 %v632
        %655 = vmatprep.subr.bf16.mxu0 0
        %656 = vmatpush1.bf16.msra.mxu0 %v633
        %657 = vmatprep.subr.bf16.mxu0 0
        %658 = vmatpush1.bf16.msra.mxu0 %v634
        %659 = vmatprep.subr.bf16.mxu0 0
        %660 = vmatpush1.bf16.msra.mxu0 0
        %661 = vmatprep.subr.bf16.mxu0 0
        %662 = vmatpush1.bf16.msra.mxu0 0
        %663 = vmatprep.subr.bf16.mxu0 0
        %664 = vmatpush1.bf16.msra.mxu0 0
        %665 = vmatprep.subr.bf16.mxu0 0
        %666 = vmatpush1.bf16.msra.mxu0 0
        %667 = vmatprep.subr.bf16.mxu0 0
        %668 = vmatpush1.bf16.msra.mxu0 0
        %669 = vmatprep.subr.bf16.mxu0 0
        %670 = vmatpush1.bf16.msra.mxu0 0
        %671 = vmatprep.subr.bf16.mxu0 0
        %672 = vmatpush1.bf16.msra.mxu0 0
        %673 = vmatprep.subr.bf16.mxu0 0
        %674 = vmatpush1.bf16.msra.mxu0 0
        %675 = vmatprep.mubr.bf16.mxu0 0
        %676 = vmatmul.mubr.bf16.gmra.mrb[0].mxu0 %v578
        %v677 = vpop.f32.mrb[0].mxu0
        %v678 = vadd.f32 0.0, %v677
        %v679 = vpop.f32.mrb[0].mxu0
        %v680 = vpop.f32.mrb[0].mxu0
        %v681 = vpop.f32.mrb[0].mxu0
        %682 = vdwg.mxu0
        %v683 = vlaneseq
        %v684 = vand.u32 %v683, 127
        %vm685 = vcmask 523264
        %v686 = vsel %vm685, %v678, -inf
        %687 = vmax.xlane.f32.xlu0 %v686
        %v688 = vpop.xlane.xlu0 %687
        %vm689 = vcmp.eq.f32.partialorder %v678, %v688
        %v690 = vsel %vm689, %v684, 64
        %v691 = vsel %vm685, %v690, 2147483647
        %v692 = vand.u32 %v691, 65535
        %v693 = vshra.s32 %v691, 16
        %v694 = vcvt.s32.f32 %v692
        %v695 = vcvt.s32.f32 %v693
        %696 = vmin.xlane.f32.xlu0 %v695
        %v697 = vpop.xlane.xlu0 %696
        %vm698 = vcmp.eq.f32.partialorder %v695, %v697
        %v699 = vsel %vm698, %v694, inf
        %700 = vmin.xlane.f32.xlu0 %v699
        %v701 = vpop.xlane.xlu0 %700
        %v702 = vcvt.f32.s32 %v701
        %v703 = vcvt.f32.s32 %v697
        %v704 = vshll.u32 %v703, 16
        %v705 = vadd.s32 %v704, %v702
        %v706 = vlaneseq
        %v707 = vshrl.u32 %v706, 7
        %v708 = vsub.s32 %v684, %v707
        %v709 = vrot.slane %v705, %v708
        %vm710 = vcmask 57344
        %711 = vst.msk [vmem:[%s461] sm:$0x1] %vm710, %v709
        %vm712 = vcmp.eq.s32.totalorder %v684, %v705
        %v713 = vsel %vm712, 1, 0
        %v714 = vcvt.s32.f32 %v713
        %v715 = vpack.c.bf16 %v714, %v714
        %v716 = vld [vmem:[%s4] sm:$0xf]
        %v717 = vld [vmem:[%s4 + $0x4] sm:$0xf]
        %v718 = vld [vmem:[%s4 + $0x8] sm:$0xf]
        %v719 = vld [vmem:[%s4 + $0xc] sm:$0xf]
        %v720 = vld [vmem:[%s4 + $0x10] sm:$0xf]
        %v721 = vld [vmem:[%s4 + $0x14] sm:$0xf]
        %v722 = vld [vmem:[%s4 + $0x18] sm:$0xf]
        %v723 = vld [vmem:[%s4 + $0x1c] sm:$0xf]
        %v724 = vld [vmem:[%s5] sm:$0xf]
        %v725 = vld [vmem:[%s5 + $0x4] sm:$0xf]
        %v726 = vld [vmem:[%s5 + $0x8] sm:$0xf]
        %v727 = vld [vmem:[%s5 + $0xc] sm:$0xf]
        %v728 = vld [vmem:[%s5 + $0x10] sm:$0xf]
        %v729 = vld [vmem:[%s5 + $0x14] sm:$0xf]
        %v730 = vld [vmem:[%s5 + $0x18] sm:$0xf]
        %v731 = vld [vmem:[%s5 + $0x1c] sm:$0xf]
        %v740 = vunpack.c.l.b16 %v724
        %v741 = vunpack.c.l.b16 %v725
        %v742 = vunpack.c.l.b16 %v726
        %v743 = vunpack.c.l.b16 %v727
        %v744 = vunpack.c.l.b16 %v728
        %v745 = vunpack.c.l.b16 %v729
        %v746 = vunpack.c.l.b16 %v730
        %v747 = vunpack.c.l.b16 %v731
        %v748 = vpack.c.b16 %v741, %v740
        %v749 = vpack.c.b16 %v743, %v742
        %v750 = vpack.c.b16 %v745, %v744
        %v751 = vpack.c.b16 %v747, %v746
        %v757 = vsel %vm685, %v715, 0
        %759 = vmatprep.subr.bf16.mxu0 0
        %760 = vmatpush1.bf16.msra.mxu0 %v748
        %761 = vmatprep.subr.bf16.mxu0 0
        %762 = vmatpush1.bf16.msra.mxu0 %v749
        %763 = vmatprep.subr.bf16.mxu0 0
        %764 = vmatpush1.bf16.msra.mxu0 %v750
        %765 = vmatprep.subr.bf16.mxu0 0
        %766 = vmatpush1.bf16.msra.mxu0 %v751
        %767 = vmatprep.subr.bf16.mxu0 0
        %768 = vmatpush1.bf16.msra.mxu0 0
        %769 = vmatprep.subr.bf16.mxu0 0
        %770 = vmatpush1.bf16.msra.mxu0 0
        %771 = vmatprep.subr.bf16.mxu0 0
        %772 = vmatpush1.bf16.msra.mxu0 0
        %773 = vmatprep.subr.bf16.mxu0 0
        %774 = vmatpush1.bf16.msra.mxu0 0
        %775 = vmatprep.subr.bf16.mxu0 0
        %776 = vmatpush1.bf16.msra.mxu0 0
        %777 = vmatprep.subr.bf16.mxu0 0
        %778 = vmatpush1.bf16.msra.mxu0 0
        %779 = vmatprep.subr.bf16.mxu0 0
        %780 = vmatpush1.bf16.msra.mxu0 0
        %781 = vmatprep.subr.bf16.mxu0 0
        %782 = vmatpush1.bf16.msra.mxu0 0
        %783 = vmatprep.subr.bf16.mxu0 0
        %784 = vmatpush1.bf16.msra.mxu0 0
        %785 = vmatprep.subr.bf16.mxu0 0
        %786 = vmatpush1.bf16.msra.mxu0 0
        %787 = vmatprep.subr.bf16.mxu0 0
        %788 = vmatpush1.bf16.msra.mxu0 0
        %789 = vmatprep.subr.bf16.mxu0 0
        %790 = vmatpush1.bf16.msra.mxu0 0
        %791 = vmatprep.mubr.bf16.mxu0 0
        %792 = vmatmul.mubr.bf16.gmra.mrb[0].mxu0 %v757
        %v793 = vpop.f32.mrb[0].mxu0
        %v794 = vadd.f32 0.0, %v793
        %v795 = vpop.f32.mrb[0].mxu0
        %v796 = vpop.f32.mrb[0].mxu0
        %v797 = vpop.f32.mrb[0].mxu0
        %798 = vdwg.mxu0
        %v807 = vunpack.c.l.b16 %v716
        %v808 = vunpack.c.l.b16 %v717
        %v809 = vunpack.c.l.b16 %v718
        %v810 = vunpack.c.l.b16 %v719
        %v811 = vunpack.c.l.b16 %v720
        %v812 = vunpack.c.l.b16 %v721
        %v813 = vunpack.c.l.b16 %v722
        %v814 = vunpack.c.l.b16 %v723
        %v815 = vpack.c.b16 %v808, %v807
        %v816 = vpack.c.b16 %v810, %v809
        %v817 = vpack.c.b16 %v812, %v811
        %v818 = vpack.c.b16 %v814, %v813
        %823 = vmatprep.subr.bf16.mxu0 0
        %824 = vmatpush1.bf16.msra.mxu0 %v815
        %825 = vmatprep.subr.bf16.mxu0 0
        %826 = vmatpush1.bf16.msra.mxu0 %v816
        %827 = vmatprep.subr.bf16.mxu0 0
        %828 = vmatpush1.bf16.msra.mxu0 %v817
        %829 = vmatprep.subr.bf16.mxu0 0
        %830 = vmatpush1.bf16.msra.mxu0 %v818
        %831 = vmatprep.subr.bf16.mxu0 0
        %832 = vmatpush1.bf16.msra.mxu0 0
        %833 = vmatprep.subr.bf16.mxu0 0
        %834 = vmatpush1.bf16.msra.mxu0 0
        %835 = vmatprep.subr.bf16.mxu0 0
        %836 = vmatpush1.bf16.msra.mxu0 0
        %837 = vmatprep.subr.bf16.mxu0 0
        %838 = vmatpush1.bf16.msra.mxu0 0
        %839 = vmatprep.subr.bf16.mxu0 0
        %840 = vmatpush1.bf16.msra.mxu0 0
        %841 = vmatprep.subr.bf16.mxu0 0
        %842 = vmatpush1.bf16.msra.mxu0 0
        %843 = vmatprep.subr.bf16.mxu0 0
        %844 = vmatpush1.bf16.msra.mxu0 0
        %845 = vmatprep.subr.bf16.mxu0 0
        %846 = vmatpush1.bf16.msra.mxu0 0
        %847 = vmatprep.subr.bf16.mxu0 0
        %848 = vmatpush1.bf16.msra.mxu0 0
        %849 = vmatprep.subr.bf16.mxu0 0
        %850 = vmatpush1.bf16.msra.mxu0 0
        %851 = vmatprep.subr.bf16.mxu0 0
        %852 = vmatpush1.bf16.msra.mxu0 0
        %853 = vmatprep.subr.bf16.mxu0 0
        %854 = vmatpush1.bf16.msra.mxu0 0
        %855 = vmatprep.mubr.bf16.mxu0 0
        %856 = vmatmul.mubr.bf16.gmra.mrb[0].mxu0 %v757
        %v857 = vpop.f32.mrb[0].mxu0
        %v858 = vadd.f32 %v794, %v857
        %v859 = vpop.f32.mrb[0].mxu0
        %v860 = vpop.f32.mrb[0].mxu0
        %v861 = vpop.f32.mrb[0].mxu0
        %862 = vdwg.mxu0
        %863 = vst.msk [vmem:[%s448] sm:$0xff] %vm570, %v858
        %v864 = vsub.f32 %v858, %v567
        %v865 = vmul.f32 %v864, %v864
        %866 = vadd.xlane.f32.xlu0 %v865
        %v867 = vpop.xlane.xlu0 %866
        %v868 = vrot.slane %v867, 4
        %v869 = vadd.f32 %v867, %v868
        %v870 = vrot.slane %v869, 2
        %v871 = vadd.f32 %v869, %v870
        %v872 = vrot.slane %v871, 1
        %v873 = vadd.f32 %v871, %v872
        %s874 = vtos %v873
        %v875 = vstv %s874
        %vm876 = vcmask 0
        %877 = vst.msk [vmem:[%s482] sm:$0x1] %vm876, %v875
        %v878 = vld [vmem:[%s6] sm:$0xff]
        %v879 = vld [vmem:[%s6 + $0x8] sm:$0xff]
        %v880 = vld [vmem:[%s6 + $0x10] sm:$0xff]
        %v881 = vld [vmem:[%s6 + $0x18] sm:$0xff]
        %v882 = vld [vmem:[%s6 + $0x20] sm:$0xff]
        %v883 = vld [vmem:[%s6 + $0x28] sm:$0xff]
        %v884 = vld [vmem:[%s6 + $0x30] sm:$0xff]
        %v885 = vld [vmem:[%s6 + $0x38] sm:$0xff]
        %v886 = vld [vmem:[%s6 + $0x40] sm:$0xff]
        %v887 = vld [vmem:[%s6 + $0x48] sm:$0xff]
        %v888 = vld [vmem:[%s6 + $0x50] sm:$0xff]
        %v889 = vld [vmem:[%s6 + $0x58] sm:$0xff]
        %v890 = vld [vmem:[%s6 + $0x60] sm:$0xff]
        %v891 = vld [vmem:[%s6 + $0x68] sm:$0xff]
        %v892 = vld [vmem:[%s6 + $0x70] sm:$0xff]
        %v893 = vld [vmem:[%s6 + $0x78] sm:$0xff]
        %v894 = vld [vmem:[%s7] sm:$0x1]
        %v896 = vlaneseq
        %v897 = vshrl.u32 %v896, 7
        %v898 = vsub.s32 0, %v897
        %v899 = vrot.slane %v894, %v898
        %901 = vmatprep.subr.mxu0 0.0
        %902 = vmatpush1.msra.mxu0 %v878
        %903 = vmatprep.subr.mxu0 0.0
        %904 = vmatpush1.msra.mxu0 %v879
        %905 = vmatprep.subr.mxu0 0.0
        %906 = vmatpush1.msra.mxu0 %v880
        %907 = vmatprep.subr.mxu0 0.0
        %908 = vmatpush1.msra.mxu0 %v881
        %909 = vmatprep.subr.mxu0 0.0
        %910 = vmatpush1.msra.mxu0 %v882
        %911 = vmatprep.subr.mxu0 0.0
        %912 = vmatpush1.msra.mxu0 %v883
        %913 = vmatprep.subr.mxu0 0.0
        %914 = vmatpush1.msra.mxu0 %v884
        %915 = vmatprep.subr.mxu0 0.0
        %916 = vmatpush1.msra.mxu0 %v885
        %917 = vmatprep.subr.mxu0 0.0
        %918 = vmatpush1.msra.mxu0 %v886
        %919 = vmatprep.subr.mxu0 0.0
        %920 = vmatpush1.msra.mxu0 %v887
        %921 = vmatprep.subr.mxu0 0.0
        %922 = vmatpush1.msra.mxu0 %v888
        %923 = vmatprep.subr.mxu0 0.0
        %924 = vmatpush1.msra.mxu0 %v889
        %925 = vmatprep.subr.mxu0 0.0
        %926 = vmatpush1.msra.mxu0 %v890
        %927 = vmatprep.subr.mxu0 0.0
        %928 = vmatpush1.msra.mxu0 %v891
        %929 = vmatprep.subr.mxu0 0.0
        %930 = vmatpush1.msra.mxu0 %v892
        %931 = vmatprep.subr.mxu0 0.0
        %932 = vmatpush1.msra.mxu0 %v893
        %933 = vmatprep.subr.mxu0 0.0
        %934 = vmatpush1.msra.mxu0 0.0
        %935 = vmatprep.subr.mxu0 0.0
        %936 = vmatpush1.msra.mxu0 0.0
        %937 = vmatprep.subr.mxu0 0.0
        %938 = vmatpush1.msra.mxu0 0.0
        %939 = vmatprep.subr.mxu0 0.0
        %940 = vmatpush1.msra.mxu0 0.0
        %941 = vmatprep.subr.mxu0 0.0
        %942 = vmatpush1.msra.mxu0 0.0
        %943 = vmatprep.subr.mxu0 0.0
        %944 = vmatpush1.msra.mxu0 0.0
        %945 = vmatprep.subr.mxu0 0.0
        %946 = vmatpush1.msra.mxu0 0.0
        %947 = vmatprep.subr.mxu0 0.0
        %948 = vmatpush1.msra.mxu0 0.0
        %949 = vmatprep.subr.mxu0 0.0
        %950 = vmatpush1.msra.mxu0 0.0
        %951 = vmatprep.subr.mxu0 0.0
        %952 = vmatpush1.msra.mxu0 0.0
        %953 = vmatprep.subr.mxu0 0.0
        %954 = vmatpush1.msra.mxu0 0.0
        %955 = vmatprep.subr.mxu0 0.0
        %956 = vmatpush1.msra.mxu0 0.0
        %957 = vmatprep.subr.mxu0 0.0
        %958 = vmatpush1.msra.mxu0 0.0
        %959 = vmatprep.subr.mxu0 0.0
        %960 = vmatpush1.msra.mxu0 0.0
        %961 = vmatprep.subr.mxu0 0.0
        %962 = vmatpush1.msra.mxu0 0.0
        %963 = vmatprep.subr.mxu0 0.0
        %964 = vmatpush1.msra.mxu0 0.0
        %965 = vmatprep.mubr.f32.mxu0 0.0
        %966 = vmatmul.mubr.f32.gmra.mrb[0].mxu0 %v858
        %v967 = vpop.f32.mrb[0].mxu0
        %v968 = vadd.f32 %v899, %v967
        %v969 = vpop.f32.mrb[0].mxu0
        %970 = vdwg.mxu0
        %971 = vst.msk [vmem:[%s455] sm:$0xff] %vm496, %v968
        %s972 = sand.u32 %s230, 1
        %s973 = scalar_lea.sflag [#allocation3], %s972
        %s974 = sand.u32 %s230, 1
        %s975 = smul.addr %s974, 8
        %s976 = scalar_lea.vmem [#allocation2], %s975
        %s977 = sand.u32 %s33, 1
        %s978 = scalar_lea.sflag [#allocation5], %s977
        %s979 = sand.u32 %s258, 1
        %s980 = smul.addr %s979, 8
        %s981 = scalar_lea.vmem [#allocation4], %s980
        %s982 = sand.u32 %s33, 1
        %s983 = scalar_lea.sflag [#allocation5], %s982
        %s984 = sand.u32 %s286, 1
        %s985 = smul.addr %s984, 8
        %s986 = scalar_lea.vmem [#allocation6], %s985
        %s987 = sand.u32 %s314, 1
        %s988 = scalar_lea.sflag [#allocation8], %s987
        %s989 = sand.u32 %s314, 1
        %s990 = scalar_lea.vmem [#allocation7], %s989
        %p991 = scmp.lt.s32.totalorder %s37, 1
        %s992 = scalar_select %p991, %s37, 1
        %p993 = scmp.lt.s32.totalorder %s38, 0
        %s994 = scalar_select %p993, %s38, 0
        %s995 = sadd.s32 %s994, %s992
        %s996 = scalar_lea.vmem %s12, %s995
        // Predicated region
        $region53: #{tpu_custom_call.1} parent=51 // pred_check
          %p997 = pneg %p240
        $region54: #{tpu_custom_call.1} parent=51 // pred_check_branch
          %999 = sbr.rel (%p997) target = $region56
        $region55: #{tpu_custom_call.1} parent=51 // pred_region
          %s1001 = ssub.s32 128, 128
          %1002 = vsyncadd %s973, %s1001
          %s1003 = sadd.s32 %s38, %s37
          %s1004 = smul.addr %s1003, 128
          %s1005 = scalar_lea.hbm %s8, %s1004
          %s1007 = sshll.u32 %s976, 4
          %s1008 = int_to_ptr.vmem [resolvable:$true] %s1007
          %1010 = dma.vmem_to_hbm [thread:$0]  %s1008, 128, %s1005, %s973
        $region56: #{tpu_custom_call.1} parent=51 // pred_fallthru
          _
        // Predicated region
        $region57: #{tpu_custom_call.1} parent=51 // pred_check
          %p1011 = pneg %p268
        $region58: #{tpu_custom_call.1} parent=51 // pred_check_branch
          %1013 = sbr.rel (%p1011) target = $region60
        $region59: #{tpu_custom_call.1} parent=51 // pred_region
          %s1015 = ssub.s32 128, 128
          %1016 = vsyncadd %s978, %s1015
          %s1017 = sadd.s32 %s38, %s37
          %s1018 = smul.addr %s1017, 128
          %s1019 = scalar_lea.hbm %s9, %s1018
          %s1021 = sshll.u32 %s981, 4
          %s1022 = int_to_ptr.vmem [resolvable:$true] %s1021
          %1024 = dma.vmem_to_hbm [thread:$0]  %s1022, 128, %s1019, %s978
        $region60: #{tpu_custom_call.1} parent=51 // pred_fallthru
          _
        // Predicated region
        $region61: #{tpu_custom_call.1} parent=51 // pred_check
          %p1025 = pneg %p296
        $region62: #{tpu_custom_call.1} parent=51 // pred_check_branch
          %1027 = sbr.rel (%p1025) target = $region64
        $region63: #{tpu_custom_call.1} parent=51 // pred_region
          %s1029 = ssub.s32 128, 128
          %1030 = vsyncadd %s983, %s1029
          %s1031 = sadd.s32 %s38, %s37
          %s1032 = smul.addr %s1031, 128
          %s1033 = scalar_lea.hbm %s10, %s1032
          %s1035 = sshll.u32 %s986, 4
          %s1036 = int_to_ptr.vmem [resolvable:$true] %s1035
          %1038 = dma.vmem_to_hbm [thread:$0]  %s1036, 128, %s1033, %s983
        $region64: #{tpu_custom_call.1} parent=51 // pred_fallthru
          _
        // Predicated region
        $region65: #{tpu_custom_call.1} parent=51 // pred_check
          %p1039 = pneg %p324
        $region66: #{tpu_custom_call.1} parent=51 // pred_check_branch
          %1041 = sbr.rel (%p1039) target = $region68
        $region67: #{tpu_custom_call.1} parent=51 // pred_region
          %s1043 = ssub.s32 16, 16
          %1044 = vsyncadd %s988, %s1043
          %s1045 = sadd.s32 %s38, %s37
          %s1046 = smul.addr %s1045, 16
          %s1047 = scalar_lea.hbm %s11, %s1046
          %s1049 = sshll.u32 %s990, 4
          %s1050 = int_to_ptr.vmem [resolvable:$true] %s1049
          %1052 = dma.vmem_to_hbm [thread:$0]  %s1050, 16, %s1047, %s988
        $region68: #{tpu_custom_call.1} parent=51 // pred_fallthru
          _
        // Predicated region
        $region69: #{tpu_custom_call.1} parent=51 // pred_check
          %p1053 = pneg %p352
        $region70: #{tpu_custom_call.1} parent=51 // pred_check_branch
          %1055 = sbr.rel (%p1053) target = $region72
        $region71: #{tpu_custom_call.1} parent=51 // pred_region
          _
        $region72: #{tpu_custom_call.1} parent=51 // pred_fallthru
          _
      $region52: #{tpu_custom_call.1} parent=5 // pred_fallthru
        _
      %p1056 = scmp.le.s32.totalorder 2, %s28
      // Predicated region
      $region73: #{tpu_custom_call.1} parent=5 // pred_check
        %p1057 = pneg %p1056
      $region74: #{tpu_custom_call.1} parent=5 // pred_check_branch
        %1059 = sbr.rel (%p1057) target = $region76
      $region75: #{tpu_custom_call.1} parent=5 // pred_region
        %s1060 = ssub.s32 %s28, 2
        // Predicated region
        $region77: #{tpu_custom_call.1} parent=75 // pred_check
          %p1061 = pneg %p246
        $region78: #{tpu_custom_call.1} parent=75 // pred_check_branch
          %1063 = sbr.rel (%p1061) target = $region80
        $region79: #{tpu_custom_call.1} parent=75 // pred_region
          %s1064 = sand.u32 %s231, 1
          %s1065 = scalar_lea.sflag [#allocation3], %s1064
          %s1066 = sand.u32 %s231, 1
          %s1067 = smul.addr %s1066, 8
          %s1068 = scalar_lea.vmem [#allocation2], %s1067
          %1069 = dma.done %s1065, 128
        $region80: #{tpu_custom_call.1} parent=75 // pred_fallthru
          _
        // Predicated region
        $region81: #{tpu_custom_call.1} parent=75 // pred_check
          %p1070 = pneg %p274
        $region82: #{tpu_custom_call.1} parent=75 // pred_check_branch
          %1072 = sbr.rel (%p1070) target = $region84
        $region83: #{tpu_custom_call.1} parent=75 // pred_region
          %s1073 = sand.u32 %s34, 1
          %s1074 = scalar_lea.sflag [#allocation5], %s1073
          %s1075 = sand.u32 %s259, 1
          %s1076 = smul.addr %s1075, 8
          %s1077 = scalar_lea.vmem [#allocation4], %s1076
          %1078 = dma.done %s1074, 128
        $region84: #{tpu_custom_call.1} parent=75 // pred_fallthru
          _
        // Predicated region
        $region85: #{tpu_custom_call.1} parent=75 // pred_check
          %p1079 = pneg %p302
        $region86: #{tpu_custom_call.1} parent=75 // pred_check_branch
          %1081 = sbr.rel (%p1079) target = $region88
        $region87: #{tpu_custom_call.1} parent=75 // pred_region
          %s1082 = sand.u32 %s34, 1
          %s1083 = scalar_lea.sflag [#allocation5], %s1082
          %s1084 = sand.u32 %s287, 1
          %s1085 = smul.addr %s1084, 8
          %s1086 = scalar_lea.vmem [#allocation6], %s1085
          %1087 = dma.done %s1083, 128
        $region88: #{tpu_custom_call.1} parent=75 // pred_fallthru
          _
        // Predicated region
        $region89: #{tpu_custom_call.1} parent=75 // pred_check
          %p1088 = pneg %p330
        $region90: #{tpu_custom_call.1} parent=75 // pred_check_branch
          %1090 = sbr.rel (%p1088) target = $region92
        $region91: #{tpu_custom_call.1} parent=75 // pred_region
          %s1091 = sand.u32 %s315, 1
          %s1092 = scalar_lea.sflag [#allocation8], %s1091
          %s1093 = sand.u32 %s315, 1
          %s1094 = scalar_lea.vmem [#allocation7], %s1093
          %1095 = dma.done %s1092, 16
        $region92: #{tpu_custom_call.1} parent=75 // pred_fallthru
          _
        // Predicated region
        $region93: #{tpu_custom_call.1} parent=75 // pred_check
          %p1096 = pneg %p358
        $region94: #{tpu_custom_call.1} parent=75 // pred_check_branch
          %1098 = sbr.rel (%p1096) target = $region96
        $region95: #{tpu_custom_call.1} parent=75 // pred_region
          %p1099 = scmp.lt.s32.totalorder %s39, 1
          %s1100 = scalar_select %p1099, %s39, 1
          %p1101 = scmp.lt.s32.totalorder %s40, 0
          %s1102 = scalar_select %p1101, %s40, 0
          %s1103 = sadd.s32 %s1102, %s1100
          %s1104 = scalar_lea.vmem %s12, %s1103
        $region96: #{tpu_custom_call.1} parent=75 // pred_fallthru
          _
      $region76: #{tpu_custom_call.1} parent=5 // pred_fallthru
        _
    $region6: #{tpu_custom_call.1} parent=1 // loop_footer
      %s32 = sadd.s32 1, %s28
    $region7: #{tpu_custom_call.1} parent=1 // loop_footer_branch
      %27 = sbr.rel target = $region3
    $region8: #{tpu_custom_call.1} parent=1 // loop_exit
      _
    %1105 = vsyncpa [#allocation3], 1
    %s1106 = scalar_lea.sflag [#allocation3], 1
    %1107 = vsyncpa %s1106, 1
    %1108 = vsyncpa [#allocation5], 1
    %s1109 = scalar_lea.sflag [#allocation5], 1
    %1110 = vsyncpa %s1109, 1
    %1111 = vsyncpa [#allocation8], 1
    %s1112 = scalar_lea.sflag [#allocation8], 1
    %1113 = vsyncpa %s1112, 1

</llo_original>
